<compile_context>
chip_gen: v7x
topology: tpu7x:2x2x1
jax: 0.10.0
libtpu: 0.0.40
codegen_flags: <defaults>
</compile_context>

<pallas_src>
import functools
import math

import jax
import jax.numpy as jnp
from jax import lax
from jax.experimental import pallas as pl
from jax.experimental.pallas import tpu as pltpu

EXPAND_FACTOR = 2
QK_DIM_DIV = 8
LN_EPS = 1e-5


# ----------------------------- in-kernel helpers -----------------------------

def _layer_norm(t):
    # F.layer_norm(x, [D]) with no affine params: biased variance, eps=1e-5.
    mean = jnp.mean(t, axis=-1, keepdims=True)
    var = jnp.mean(jnp.square(t - mean), axis=-1, keepdims=True)
    return (t - mean) * lax.rsqrt(var + LN_EPS)


def _erf(x):
    # Abramowitz & Stegun 7.1.26 rational approximation; max abs error ~1.5e-7.
    a1, a2, a3, a4, a5 = 0.254829592, -0.284496736, 1.421413741, -1.453152027, 1.061405429
    p = 0.3275911
    ax = jnp.abs(x)
    t = 1.0 / (1.0 + p * ax)
    poly = ((((a5 * t + a4) * t + a3) * t + a2) * t + a1) * t
    y = 1.0 - poly * jnp.exp(-ax * ax)
    return jnp.where(x >= 0, y, -y)


def _gelu_erf(x):
    # torch.nn.functional.gelu default = exact (erf-based) GELU.
    return 0.5 * x * (1.0 + _erf(x * (1.0 / math.sqrt(2.0))))


def _gelu_tanh(x):
    # tanh approximation: tanh lands on the EUP slot (co-issues with MXU/VALU).
    c = math.sqrt(2.0 / math.pi)
    return 0.5 * x * (1.0 + jnp.tanh(c * (x + 0.044715 * (x * x * x))))


# --------------------------------- kernel ------------------------------------

def _cross_attention_kernel(mask_ref, kv_ref, x_ref, wkv_ref, wq_ref, proj_ref,
                            o_ref, *, qk_pad, compute_dtype, fast_gelu,
                            approx_softmax):
    Bb, S, D = x_ref.shape
    rows = Bb * S
    ed_minus_d = (wq_ref.shape[1] - qk_pad) // 2
    gelu = _gelu_tanh if fast_gelu else _gelu_erf

    # Flatten batch into sublanes for all dense (row x D) work.
    kv2 = kv_ref[...].reshape(rows, D)
    x2 = x_ref[...].reshape(rows, D)

    kvn = _layer_norm(kv2).astype(compute_dtype)
    qn = _layer_norm(x2).astype(compute_dtype)

    # One wide, lane-aligned projection matmul per side (f32 accumulation).
    ekv = jnp.dot(kvn, wkv_ref[...], preferred_element_type=jnp.float32)  # (rows, qk_pad+2D)
    eq = jnp.dot(qn, wq_ref[...], preferred_element_type=jnp.float32)     # (rows, qk_pad+2(ED-D))

    kp = ekv[:, :qk_pad]                          # (rows, qk_pad) zero-padded cols
    lin_v = ekv[:, qk_pad:qk_pad + D]             # (rows, D)
    pre_v = ekv[:, qk_pad + D:]                   # (rows, D)

    qp = eq[:, :qk_pad]                           # 1/sqrt(qk) folded into weights
    lin_l = eq[:, qk_pad:qk_pad + ed_minus_d]     # (rows, ED-D)
    pre_l = eq[:, qk_pad + ed_minus_d:]           # (rows, ED-D)

    v = lin_v * gelu(pre_v)                       # (rows, D)
    loc = lin_l * gelu(pre_l)                     # (rows, ED-D)

    # Attention (batched).  Padded q/k columns are exactly zero -> q·k^T unchanged.
    q3 = qp.astype(compute_dtype).reshape(Bb, S, qk_pad)
    k3 = kp.astype(compute_dtype).reshape(Bb, S, qk_pad)
    v3 = v.astype(compute_dtype).reshape(Bb, S, D)

    s = jnp.einsum('bqd,bkd->bqk', q3, k3,
                   preferred_element_type=jnp.float32)                    # (Bb, S, S)
    s = s + mask_ref[...][None, :, :]             # hoisted causal/position-bias mask

    m = jnp.max(s, axis=-1, keepdims=True)
    e = jnp.exp(s - m)                            # in [0, 1]: bf16 cast below is safe
    denom = jnp.sum(e, axis=-1, keepdims=True)    # (Bb, S, 1)

    # Deferred normalization: normalize the (rows, D) result, not the (S, S) scores.
    att_un = jnp.einsum('bqk,bkd->bqd', e.astype(compute_dtype), v3,
                        preferred_element_type=jnp.float32)               # (Bb, S, D)
    att = (att_un * pl.reciprocal(denom, approx=approx_softmax)).reshape(rows, D)

    # cat([loc, att], -1) @ project  -> single K=2D matmul (256-deep MXU on v6e/v7x).
    cat = jnp.concatenate(
        [loc.astype(compute_dtype), att.astype(compute_dtype)], axis=-1)   # (rows, ED)
    out = x2 + jnp.dot(cat, proj_ref[...], preferred_element_type=jnp.float32)
    o_ref[...] = out.reshape(Bb, S, D)


# -------------------------------- wrapper ------------------------------------

def _vmem_capacity_bytes():
    try:
        info = pltpu.get_tpu_info()
        return int(getattr(info, "vmem_capacity_bytes", 128 * 1024 * 1024))
    except Exception:
        return 128 * 1024 * 1024


def _largest_divisor_leq(n, cap):
    cap = max(1, min(n, cap))
    for d in range(cap, 0, -1):
        if n % d == 0:
            return d
    return 1


def _choose_block_b(B, S, D, qk_pad, rows_target, vmem_limit):
    ed = D * EXPAND_FACTOR
    # Rough per-batch-element live VMEM (bytes): score-shaped transients (s, e +
    # slack), row activations (kv/x/out/v/att), and the two expand outputs.
    per_b = 4 * (4 * S * S
                 + 8 * S * D
                 + 2 * S * (2 * qk_pad + 2 * D + 2 * (ed - D)))
    budget = max(per_b, vmem_limit - 8 * 1024 * 1024 - 4 * S * S)
    cap = max(1, min(rows_target // max(S, 1), budget // per_b))
    if B >= 2:
        cap = min(cap, B // 2)   # >= 2 grid steps: v7x megacore sharding + pipelining
    return _largest_divisor_leq(B, max(1, cap))


def prepare_weights(expand_kv, expand_q, project, *, compute_dtype=jnp.bfloat16):
    """One-time (parameter-load time) weight fusion / padding / casting.

    Pads the qk column block of each expand weight up to a 128-lane boundary so
    all in-kernel slices are lane-aligned, and folds 1/sqrt(qk) into the qk
    columns of expand_q so the kernel never scales the (Bb,S,S) scores.
    # TODO(synk): qk_pad emits 112 zero output lanes per expand matmul; revisit
    #   an unpadded tail-placed qk block once verified (lower_as_mlir) that the
    #   16-lane slice lowers without a relayout copy.
    """
    D = expand_kv.shape[0]
    qk = D // QK_DIM_DIV
    qk_pad = ((qk + 127) // 128) * 128
    scale = 1.0 / math.sqrt(qk)

    def _pad_qk(w, col_scale):
        z = jnp.zeros((w.shape[0], qk_pad - qk), w.dtype)
        return jnp.concatenate([w[:, :qk] * col_scale, z, w[:, qk:]], axis=1)

    return dict(
        w_kv=_pad_qk(expand_kv, 1.0).astype(compute_dtype),   # (D, qk_pad + 2D)
        w_q=_pad_qk(expand_q, scale).astype(compute_dtype),   # (D, qk_pad + 2(ED-D))
        proj=project.astype(compute_dtype),                   # (ED, D), unsplit
        qk_pad=qk_pad,
        compute_dtype=compute_dtype,
    )


def cross_attention(kv, x, params, position_bias_mult, *,
                    fast_gelu=None, approx_softmax=False, block_b=None):
    B, S, D = x.shape
    compute_dtype = params["compute_dtype"]
    qk_pad = params["qk_pad"]
    if fast_gelu is None:
        fast_gelu = compute_dtype != jnp.float32

    # Per-generation budgets: v7x has 64 MiB VMEM/TC, v5e/v6e have 128 MiB.
    vmem_cap = _vmem_capacity_bytes()
    small_vmem = vmem_cap <= 96 * 1024 * 1024
    vmem_limit = (40 if small_vmem else 64) * 1024 * 1024
    rows_target = 512 if small_vmem else 1024

    if block_b is None:
        block_b = _choose_block_b(B, S, D, qk_pad, rows_target, vmem_limit)
    assert B % block_b == 0
    grid = (B // block_b,)

    # Batch-invariant causal/position-bias mask hoisted out of the kernel.
    i = jnp.arange(S)[:, None]
    j = jnp.arange(S)[None, :]
    mask = jnp.where(j <= i,
                     jax.nn.sigmoid((j - i).astype(jnp.float32) + position_bias_mult),
                     -jnp.inf).astype(jnp.float32)

    kernel = functools.partial(_cross_attention_kernel,
                               qk_pad=qk_pad, compute_dtype=compute_dtype,
                               fast_gelu=fast_gelu, approx_softmax=approx_softmax)

    w_kv, w_q, proj = params["w_kv"], params["w_q"], params["proj"]

    in_specs = [
        pl.BlockSpec((S, S), lambda b: (0, 0)),                 # mask (batch-invariant)
        pl.BlockSpec((block_b, S, D), lambda b: (b, 0, 0)),     # kv
        pl.BlockSpec((block_b, S, D), lambda b: (b, 0, 0)),     # x
        pl.BlockSpec(w_kv.shape, lambda b: (0, 0)),             # fused expand_kv (padded)
        pl.BlockSpec(w_q.shape, lambda b: (0, 0)),              # fused expand_q (padded+scaled)
        pl.BlockSpec(proj.shape, lambda b: (0, 0)),             # project (ED, D)
    ]
    out_spec = pl.BlockSpec((block_b, S, D), lambda b: (b, 0, 0))

    return pl.pallas_call(
        kernel,
        out_shape=jax.ShapeDtypeStruct((B, S, D), jnp.float32),
        grid=grid,
        in_specs=in_specs,
        out_specs=out_spec,
        compiler_params=pltpu.CompilerParams(
            # independent batch blocks -> megacore sharding on v7x, neutral elsewhere
            dimension_semantics=("parallel",),
            vmem_limit_bytes=vmem_limit),
    )(mask, kv, x, w_kv, w_q, proj)


# ------------------------------ pure-JAX reference ----------------------------

def cross_attention_ref(kv, x, expand_kv, expand_q, project, pbm):
    B, S, D = x.shape
    qk = D // QK_DIM_DIV
    ED = D * EXPAND_FACTOR

    def ln(t):
        mean = jnp.mean(t, axis=-1, keepdims=True)
        var = jnp.mean(jnp.square(t - mean), axis=-1, keepdims=True)
        return (t - mean) / jnp.sqrt(var + LN_EPS)

    kvn = ln(kv)
    qn = ln(x)
    ekv = kvn @ expand_kv
    k, lin_v, pre_v = ekv[..., :qk], ekv[..., qk:qk + D], ekv[..., qk + D:]
    eq = qn @ expand_q
    q, lin_l, pre_l = eq[..., :qk], eq[..., qk:qk + (ED - D)], eq[..., qk + (ED - D):]
    v = lin_v * jax.nn.gelu(pre_v, approximate=False)
    loc = lin_l * jax.nn.gelu(pre_l, approximate=False)

    i = jnp.arange(S)[:, None]
    j = jnp.arange(S)[None, :]
    mask = jnp.where(j <= i, jax.nn.sigmoid((j - i).astype(jnp.float32) + pbm), -jnp.inf)
    s = jnp.einsum("bqc,bkc->bqk", q, k) / math.sqrt(qk) + mask
    scores = jax.nn.softmax(s, axis=-1)
    att = jnp.einsum("bqk,bkd->bqd", scores, v)
    return x + jnp.concatenate([loc, att], -1) @ project


# ----------------------------------- main -------------------------------------

def _xavier_uniform(key, shape):
    # torch.nn.init.xavier_uniform_ for a 2-D tensor (fan_in=size(1), fan_out=size(0)).
    fan_in, fan_out = shape[1], shape[0]
    bound = math.sqrt(6.0 / (fan_in + fan_out))
    return jax.random.uniform(key, shape, jnp.float32, -bound, bound)


if __name__ == "__main__":
    B, S, D = 2, 16, 128          # small shapes; D=128 keeps the lane dim full
    qk = D // QK_DIM_DIV          # 16
    ED = D * EXPAND_FACTOR        # 256

    key = jax.random.PRNGKey(0)
    k_kv, k_x, k_w1, k_w2, k_w3 = jax.random.split(key, 5)

    kv = jax.random.normal(k_kv, (B, S, D), jnp.float32)
    x = jax.random.normal(k_x, (B, S, D), jnp.float32)

    expand_kv = _xavier_uniform(k_w1, (D, qk + 2 * D))
    expand_q = _xavier_uniform(k_w2, (D, qk + 2 * (ED - D)))
    project = _xavier_uniform(k_w3, (ED, D))
    position_bias_mult = 4.0

    ref = jax.block_until_ready(
        cross_attention_ref(kv, x, expand_kv, expand_q, project, position_bias_mult))

    # Exact (f32 MXU inputs, erf GELU, exact softmax divide): tight tolerance.
    params_f32 = prepare_weights(expand_kv, expand_q, project, compute_dtype=jnp.float32)
    out_f32 = jax.block_until_ready(
        cross_attention(kv, x, params_f32, position_bias_mult))
    if not jnp.allclose(out_f32, ref, rtol=1e-4, atol=1e-4):
        max_err = float(jnp.max(jnp.abs(out_f32 - ref)))
        raise AssertionError(f"f32 Pallas kernel mismatch vs reference, max abs err {max_err}")

    # Fast default path (bf16 MXU inputs, f32 accumulation, tanh GELU, exact
    # softmax divide): looser tolerance reflecting bf16 input rounding.
    params_bf16 = prepare_weights(expand_kv, expand_q, project, compute_dtype=jnp.bfloat16)
    out_bf16 = jax.block_until_ready(
        cross_attention(kv, x, params_bf16, position_bias_mult))
    if not jnp.allclose(out_bf16, ref, rtol=5e-2, atol=2.5e-1):
        max_err = float(jnp.max(jnp.abs(out_bf16 - ref)))
        raise AssertionError(f"bf16 Pallas kernel mismatch vs reference, max abs err {max_err}")

    print("KERNEL_OK")
</pallas_src>

<mosaic_0001>
module attributes {stable_mosaic.version = 11 : i64} {
  func.func @_cross_attention_kernel(%arg0: i32, %arg1: memref<16x16xf32, #tpu.memory_space<vmem>>, %arg2: memref<1x16x128xf32, #tpu.memory_space<vmem>>, %arg3: memref<1x16x128xf32, #tpu.memory_space<vmem>>, %arg4: memref<128x384xf32, #tpu.memory_space<vmem>>, %arg5: memref<128x384xf32, #tpu.memory_space<vmem>>, %arg6: memref<256x128xf32, #tpu.memory_space<vmem>>, %arg7: memref<1x16x128xf32, #tpu.memory_space<vmem>>) attributes {dimension_semantics = [#tpu.dimension_semantics<parallel>], iteration_bounds = array<i64: 2>, scalar_prefetch = 0 : i64, scratch_operands = 0 : i64, tpu.core_type = #tpu.core_type<tc>, window_params = [{pipeline_mode = #tpu.pipeline_mode<synchronous>, transform_indices = @transform_0, window_bounds = array<i64: 16, 16>}, {transform_indices = @transform_1, window_bounds = array<i64: 1, 16, 128>}, {transform_indices = @transform_2, window_bounds = array<i64: 1, 16, 128>}, {pipeline_mode = #tpu.pipeline_mode<synchronous>, transform_indices = @transform_3, window_bounds = array<i64: 128, 384>}, {pipeline_mode = #tpu.pipeline_mode<synchronous>, transform_indices = @transform_4, window_bounds = array<i64: 128, 384>}, {pipeline_mode = #tpu.pipeline_mode<synchronous>, transform_indices = @transform_5, window_bounds = array<i64: 256, 128>}, {transform_indices = @transform_6, window_bounds = array<i64: 1, 16, 128>}]} {
    %c0 = arith.constant 0 : index
    %c0_0 = arith.constant 0 : index
    %c0_1 = arith.constant 0 : index
    %0 = vector.load %arg2[%c0, %c0_0, %c0_1] : memref<1x16x128xf32, #tpu.memory_space<vmem>>, vector<1x16x128xf32>
    %1 = vector.shape_cast %0 : vector<1x16x128xf32> to vector<16x128xf32>
    %c0_2 = arith.constant 0 : index
    %c0_3 = arith.constant 0 : index
    %c0_4 = arith.constant 0 : index
    %2 = vector.load %arg3[%c0_2, %c0_3, %c0_4] : memref<1x16x128xf32, #tpu.memory_space<vmem>>, vector<1x16x128xf32>
    %3 = vector.shape_cast %2 : vector<1x16x128xf32> to vector<16x128xf32>
    %cst = arith.constant dense<0.000000e+00> : vector<16xf32>
    %4 = vector.multi_reduction <add>, %1, %cst [1] : vector<16x128xf32> to vector<16xf32>
    %5 = vector.shape_cast %4 : vector<16xf32> to vector<16x1xf32>
    %cst_5 = arith.constant 1.280000e+02 : f32
    %6 = vector.broadcast %cst_5 : f32 to vector<16x1xf32>
    %7 = arith.divf %5, %6 : vector<16x1xf32>
    %8 = vector.broadcast %7 : vector<16x1xf32> to vector<16x128xf32>
    %9 = arith.subf %1, %8 : vector<16x128xf32>
    %10 = arith.mulf %9, %9 : vector<16x128xf32>
    %cst_6 = arith.constant dense<0.000000e+00> : vector<16xf32>
    %11 = vector.multi_reduction <add>, %10, %cst_6 [1] : vector<16x128xf32> to vector<16xf32>
    %12 = vector.shape_cast %11 : vector<16xf32> to vector<16x1xf32>
    %cst_7 = arith.constant 1.280000e+02 : f32
    %13 = vector.broadcast %cst_7 : f32 to vector<16x1xf32>
    %14 = arith.divf %12, %13 : vector<16x1xf32>
    %15 = vector.broadcast %7 : vector<16x1xf32> to vector<16x128xf32>
    %16 = arith.subf %1, %15 : vector<16x128xf32>
    %cst_8 = arith.constant 9.99999974E-6 : f32
    %17 = vector.broadcast %cst_8 : f32 to vector<16x1xf32>
    %18 = arith.addf %14, %17 : vector<16x1xf32>
    %19 = math.rsqrt %18 : vector<16x1xf32>
    %20 = vector.broadcast %19 : vector<16x1xf32> to vector<16x128xf32>
    %21 = arith.mulf %16, %20 : vector<16x128xf32>
    %cst_9 = arith.constant dense<0.000000e+00> : vector<16xf32>
    %22 = vector.multi_reduction <add>, %3, %cst_9 [1] : vector<16x128xf32> to vector<16xf32>
    %23 = vector.shape_cast %22 : vector<16xf32> to vector<16x1xf32>
    %cst_10 = arith.constant 1.280000e+02 : f32
    %24 = vector.broadcast %cst_10 : f32 to vector<16x1xf32>
    %25 = arith.divf %23, %24 : vector<16x1xf32>
    %26 = vector.broadcast %25 : vector<16x1xf32> to vector<16x128xf32>
    %27 = arith.subf %3, %26 : vector<16x128xf32>
    %28 = arith.mulf %27, %27 : vector<16x128xf32>
    %cst_11 = arith.constant dense<0.000000e+00> : vector<16xf32>
    %29 = vector.multi_reduction <add>, %28, %cst_11 [1] : vector<16x128xf32> to vector<16xf32>
    %30 = vector.shape_cast %29 : vector<16xf32> to vector<16x1xf32>
    %cst_12 = arith.constant 1.280000e+02 : f32
    %31 = vector.broadcast %cst_12 : f32 to vector<16x1xf32>
    %32 = arith.divf %30, %31 : vector<16x1xf32>
    %33 = vector.broadcast %25 : vector<16x1xf32> to vector<16x128xf32>
    %34 = arith.subf %3, %33 : vector<16x128xf32>
    %cst_13 = arith.constant 9.99999974E-6 : f32
    %35 = vector.broadcast %cst_13 : f32 to vector<16x1xf32>
    %36 = arith.addf %32, %35 : vector<16x1xf32>
    %37 = math.rsqrt %36 : vector<16x1xf32>
    %38 = vector.broadcast %37 : vector<16x1xf32> to vector<16x128xf32>
    %39 = arith.mulf %34, %38 : vector<16x128xf32>
    %c0_14 = arith.constant 0 : index
    %c0_15 = arith.constant 0 : index
    %40 = vector.load %arg4[%c0_14, %c0_15] : memref<128x384xf32, #tpu.memory_space<vmem>>, vector<128x384xf32>
    %cst_16 = arith.constant dense<0.000000e+00> : vector<16x384xf32>
    %41 = tpu.matmul %21, %40, %cst_16 {dimension_numbers = #tpu.dot_dimension_numbers<[1], [0], [0], [1], [0, 0, 1, 1], [], []>} : vector<16x128xf32>, vector<128x384xf32>, vector<16x384xf32> -> vector<16x384xf32>
    %c0_17 = arith.constant 0 : index
    %c0_18 = arith.constant 0 : index
    %42 = vector.load %arg5[%c0_17, %c0_18] : memref<128x384xf32, #tpu.memory_space<vmem>>, vector<128x384xf32>
    %cst_19 = arith.constant dense<0.000000e+00> : vector<16x384xf32>
    %43 = tpu.matmul %39, %42, %cst_19 {dimension_numbers = #tpu.dot_dimension_numbers<[1], [0], [0], [1], [0, 0, 1, 1], [], []>} : vector<16x128xf32>, vector<128x384xf32>, vector<16x384xf32> -> vector<16x384xf32>
    %44 = vector.extract_strided_slice %41 {offsets = [0, 0], sizes = [16, 128], strides = [1, 1]} : vector<16x384xf32> to vector<16x128xf32>
    %45 = vector.extract_strided_slice %41 {offsets = [0, 128], sizes = [16, 128], strides = [1, 1]} : vector<16x384xf32> to vector<16x128xf32>
    %46 = vector.extract_strided_slice %41 {offsets = [0, 256], sizes = [16, 128], strides = [1, 1]} : vector<16x384xf32> to vector<16x128xf32>
    %47 = vector.extract_strided_slice %43 {offsets = [0, 0], sizes = [16, 128], strides = [1, 1]} : vector<16x384xf32> to vector<16x128xf32>
    %48 = vector.extract_strided_slice %43 {offsets = [0, 128], sizes = [16, 128], strides = [1, 1]} : vector<16x384xf32> to vector<16x128xf32>
    %49 = vector.extract_strided_slice %43 {offsets = [0, 256], sizes = [16, 128], strides = [1, 1]} : vector<16x384xf32> to vector<16x128xf32>
    %cst_20 = arith.constant 5.000000e-01 : f32
    %50 = vector.broadcast %cst_20 : f32 to vector<16x128xf32>
    %51 = arith.mulf %50, %46 : vector<16x128xf32>
    %cst_21 = arith.constant 0.707106769 : f32
    %52 = vector.broadcast %cst_21 : f32 to vector<16x128xf32>
    %53 = arith.mulf %46, %52 : vector<16x128xf32>
    %54 = math.absf %53 : vector<16x128xf32>
    %cst_22 = arith.constant 0.327591091 : f32
    %55 = vector.broadcast %cst_22 : f32 to vector<16x128xf32>
    %56 = arith.mulf %55, %54 : vector<16x128xf32>
    %cst_23 = arith.constant 1.000000e+00 : f32
    %57 = vector.broadcast %cst_23 : f32 to vector<16x128xf32>
    %58 = arith.addf %57, %56 : vector<16x128xf32>
    %cst_24 = arith.constant 1.000000e+00 : f32
    %59 = vector.broadcast %cst_24 : f32 to vector<16x128xf32>
    %60 = arith.divf %59, %58 : vector<16x128xf32>
    %cst_25 = arith.constant 1.06140542 : f32
    %61 = vector.broadcast %cst_25 : f32 to vector<16x128xf32>
    %62 = arith.mulf %61, %60 : vector<16x128xf32>
    %cst_26 = arith.constant -1.45315206 : f32
    %63 = vector.broadcast %cst_26 : f32 to vector<16x128xf32>
    %64 = arith.addf %62, %63 : vector<16x128xf32>
    %65 = arith.mulf %64, %60 : vector<16x128xf32>
    %cst_27 = arith.constant 1.42141378 : f32
    %66 = vector.broadcast %cst_27 : f32 to vector<16x128xf32>
    %67 = arith.addf %65, %66 : vector<16x128xf32>
    %68 = arith.mulf %67, %60 : vector<16x128xf32>
    %cst_28 = arith.constant -0.284496725 : f32
    %69 = vector.broadcast %cst_28 : f32 to vector<16x128xf32>
    %70 = arith.addf %68, %69 : vector<16x128xf32>
    %71 = arith.mulf %70, %60 : vector<16x128xf32>
    %cst_29 = arith.constant 0.254829586 : f32
    %72 = vector.broadcast %cst_29 : f32 to vector<16x128xf32>
    %73 = arith.addf %71, %72 : vector<16x128xf32>
    %74 = arith.mulf %73, %60 : vector<16x128xf32>
    %cst_30 = arith.constant 0.000000e+00 : f32
    %75 = vector.broadcast %cst_30 : f32 to vector<16x128xf32>
    %76 = arith.subf %75, %54 : vector<16x128xf32>
    %77 = arith.mulf %76, %54 : vector<16x128xf32>
    %78 = math.exp %77 : vector<16x128xf32>
    %79 = arith.mulf %74, %78 : vector<16x128xf32>
    %cst_31 = arith.constant 1.000000e+00 : f32
    %80 = vector.broadcast %cst_31 : f32 to vector<16x128xf32>
    %81 = arith.subf %80, %79 : vector<16x128xf32>
    %cst_32 = arith.constant 0.000000e+00 : f32
    %82 = vector.broadcast %cst_32 : f32 to vector<16x128xf32>
    %83 = arith.cmpf oge, %53, %82 : vector<16x128xf32>
    %cst_33 = arith.constant 0.000000e+00 : f32
    %84 = vector.broadcast %cst_33 : f32 to vector<16x128xf32>
    %85 = arith.subf %84, %81 : vector<16x128xf32>
    %86 = arith.select %83, %81, %85 : vector<16x128xi1>, vector<16x128xf32>
    %cst_34 = arith.constant 1.000000e+00 : f32
    %87 = vector.broadcast %cst_34 : f32 to vector<16x128xf32>
    %88 = arith.addf %87, %86 : vector<16x128xf32>
    %89 = arith.mulf %51, %88 : vector<16x128xf32>
    %90 = arith.mulf %45, %89 : vector<16x128xf32>
    %cst_35 = arith.constant 5.000000e-01 : f32
    %91 = vector.broadcast %cst_35 : f32 to vector<16x128xf32>
    %92 = arith.mulf %91, %49 : vector<16x128xf32>
    %cst_36 = arith.constant 0.707106769 : f32
    %93 = vector.broadcast %cst_36 : f32 to vector<16x128xf32>
    %94 = arith.mulf %49, %93 : vector<16x128xf32>
    %95 = math.absf %94 : vector<16x128xf32>
    %cst_37 = arith.constant 0.327591091 : f32
    %96 = vector.broadcast %cst_37 : f32 to vector<16x128xf32>
    %97 = arith.mulf %96, %95 : vector<16x128xf32>
    %cst_38 = arith.constant 1.000000e+00 : f32
    %98 = vector.broadcast %cst_38 : f32 to vector<16x128xf32>
    %99 = arith.addf %98, %97 : vector<16x128xf32>
    %cst_39 = arith.constant 1.000000e+00 : f32
    %100 = vector.broadcast %cst_39 : f32 to vector<16x128xf32>
    %101 = arith.divf %100, %99 : vector<16x128xf32>
    %cst_40 = arith.constant 1.06140542 : f32
    %102 = vector.broadcast %cst_40 : f32 to vector<16x128xf32>
    %103 = arith.mulf %102, %101 : vector<16x128xf32>
    %cst_41 = arith.constant -1.45315206 : f32
    %104 = vector.broadcast %cst_41 : f32 to vector<16x128xf32>
    %105 = arith.addf %103, %104 : vector<16x128xf32>
    %106 = arith.mulf %105, %101 : vector<16x128xf32>
    %cst_42 = arith.constant 1.42141378 : f32
    %107 = vector.broadcast %cst_42 : f32 to vector<16x128xf32>
    %108 = arith.addf %106, %107 : vector<16x128xf32>
    %109 = arith.mulf %108, %101 : vector<16x128xf32>
    %cst_43 = arith.constant -0.284496725 : f32
    %110 = vector.broadcast %cst_43 : f32 to vector<16x128xf32>
    %111 = arith.addf %109, %110 : vector<16x128xf32>
    %112 = arith.mulf %111, %101 : vector<16x128xf32>
    %cst_44 = arith.constant 0.254829586 : f32
    %113 = vector.broadcast %cst_44 : f32 to vector<16x128xf32>
    %114 = arith.addf %112, %113 : vector<16x128xf32>
    %115 = arith.mulf %114, %101 : vector<16x128xf32>
    %cst_45 = arith.constant 0.000000e+00 : f32
    %116 = vector.broadcast %cst_45 : f32 to vector<16x128xf32>
    %117 = arith.subf %116, %95 : vector<16x128xf32>
    %118 = arith.mulf %117, %95 : vector<16x128xf32>
    %119 = math.exp %118 : vector<16x128xf32>
    %120 = arith.mulf %115, %119 : vector<16x128xf32>
    %cst_46 = arith.constant 1.000000e+00 : f32
    %121 = vector.broadcast %cst_46 : f32 to vector<16x128xf32>
    %122 = arith.subf %121, %120 : vector<16x128xf32>
    %cst_47 = arith.constant 0.000000e+00 : f32
    %123 = vector.broadcast %cst_47 : f32 to vector<16x128xf32>
    %124 = arith.cmpf oge, %94, %123 : vector<16x128xf32>
    %cst_48 = arith.constant 0.000000e+00 : f32
    %125 = vector.broadcast %cst_48 : f32 to vector<16x128xf32>
    %126 = arith.subf %125, %122 : vector<16x128xf32>
    %127 = arith.select %124, %122, %126 : vector<16x128xi1>, vector<16x128xf32>
    %cst_49 = arith.constant 1.000000e+00 : f32
    %128 = vector.broadcast %cst_49 : f32 to vector<16x128xf32>
    %129 = arith.addf %128, %127 : vector<16x128xf32>
    %130 = arith.mulf %92, %129 : vector<16x128xf32>
    %131 = arith.mulf %48, %130 : vector<16x128xf32>
    %132 = vector.shape_cast %47 : vector<16x128xf32> to vector<1x16x128xf32>
    %133 = vector.shape_cast %44 : vector<16x128xf32> to vector<1x16x128xf32>
    %134 = vector.shape_cast %90 : vector<16x128xf32> to vector<1x16x128xf32>
    "tpu.trace_start"() <{level = 10 : i32, message = "bqd,bkd->bqk"}> : () -> ()
    %cst_50 = arith.constant dense<0.000000e+00> : vector<1x16x16xf32>
    %135 = tpu.matmul %132, %133, %cst_50 {dimension_numbers = #tpu.dot_dimension_numbers<[2], [2], [1], [1], [0, 0, 0, 1, 1, 1], [0], [0]>} : vector<1x16x128xf32>, vector<1x16x128xf32>, vector<1x16x16xf32> -> vector<1x16x16xf32>
    "tpu.trace_stop"() : () -> ()
    %c0_51 = arith.constant 0 : index
    %c0_52 = arith.constant 0 : index
    %136 = vector.load %arg1[%c0_51, %c0_52] : memref<16x16xf32, #tpu.memory_space<vmem>>, vector<16x16xf32>
    %137 = vector.shape_cast %136 : vector<16x16xf32> to vector<1x16x16xf32>
    %138 = arith.addf %135, %137 : vector<1x16x16xf32>
    %cst_53 = arith.constant dense<0xFF800000> : vector<1x16xf32>
    %139 = vector.multi_reduction <maximumf>, %138, %cst_53 [2] : vector<1x16x16xf32> to vector<1x16xf32>
    %140 = vector.shape_cast %139 : vector<1x16xf32> to vector<1x16x1xf32>
    %141 = vector.broadcast %140 : vector<1x16x1xf32> to vector<1x16x16xf32>
    %142 = arith.subf %138, %141 : vector<1x16x16xf32>
    %143 = math.exp %142 : vector<1x16x16xf32>
    %cst_54 = arith.constant dense<0.000000e+00> : vector<1x16xf32>
    %144 = vector.multi_reduction <add>, %143, %cst_54 [2] : vector<1x16x16xf32> to vector<1x16xf32>
    %145 = vector.shape_cast %144 : vector<1x16xf32> to vector<1x16x1xf32>
    "tpu.trace_start"() <{level = 10 : i32, message = "bqk,bkd->bqd"}> : () -> ()
    %cst_55 = arith.constant dense<0.000000e+00> : vector<1x16x128xf32>
    %146 = tpu.matmul %143, %134, %cst_55 {dimension_numbers = #tpu.dot_dimension_numbers<[2], [1], [1], [2], [0, 0, 0, 1, 1, 2], [0], [0]>} : vector<1x16x16xf32>, vector<1x16x128xf32>, vector<1x16x128xf32> -> vector<1x16x128xf32>
    "tpu.trace_stop"() : () -> ()
    %147 = tpu.reciprocal %145 : vector<1x16x1xf32> -> vector<1x16x1xf32>
    %148 = vector.broadcast %147 : vector<1x16x1xf32> to vector<1x16x128xf32>
    %149 = arith.mulf %146, %148 : vector<1x16x128xf32>
    %150 = vector.shape_cast %149 : vector<1x16x128xf32> to vector<16x128xf32>
    %151 = tpu.concatenate %131, %150 in 1 : vector<16x128xf32>, vector<16x128xf32> -> vector<16x256xf32>
    %c0_56 = arith.constant 0 : index
    %c0_57 = arith.constant 0 : index
    %152 = vector.load %arg6[%c0_56, %c0_57] : memref<256x128xf32, #tpu.memory_space<vmem>>, vector<256x128xf32>
    %cst_58 = arith.constant dense<0.000000e+00> : vector<16x128xf32>
    %153 = tpu.matmul %151, %152, %cst_58 {dimension_numbers = #tpu.dot_dimension_numbers<[1], [0], [0], [1], [0, 0, 1, 1], [], []>} : vector<16x256xf32>, vector<256x128xf32>, vector<16x128xf32> -> vector<16x128xf32>
    %154 = arith.addf %3, %153 : vector<16x128xf32>
    %155 = vector.shape_cast %154 : vector<16x128xf32> to vector<1x16x128xf32>
    %c0_59 = arith.constant 0 : index
    %c0_60 = arith.constant 0 : index
    %c0_61 = arith.constant 0 : index
    %156 = vector.load %arg7[%c0_59, %c0_60, %c0_61] : memref<1x16x128xf32, #tpu.memory_space<vmem>>, vector<1x16x128xf32>
    tpu.vector_store %arg7[%c0_59, %c0_60, %c0_61], %155 {strides = array<i32>} : memref<1x16x128xf32, #tpu.memory_space<vmem>>, vector<1x16x128xf32>,
    return
  }
  func.func @transform_0(%arg0: i32) -> (i32, i32) {
    %c0_i32 = arith.constant 0 : i32
    %c0_i32_0 = arith.constant 0 : i32
    %c0_i32_1 = arith.constant 0 : i32
    return %c0_i32, %c0_i32_0 : i32, i32
  }
  func.func @transform_1(%arg0: i32) -> (i32, i32, i32) {
    %c0_i32 = arith.constant 0 : i32
    %c0_i32_0 = arith.constant 0 : i32
    %c0_i32_1 = arith.constant 0 : i32
    return %arg0, %c0_i32, %c0_i32_0 : i32, i32, i32
  }
  func.func @transform_2(%arg0: i32) -> (i32, i32, i32) {
    %c0_i32 = arith.constant 0 : i32
    %c0_i32_0 = arith.constant 0 : i32
    %c0_i32_1 = arith.constant 0 : i32
    return %arg0, %c0_i32, %c0_i32_0 : i32, i32, i32
  }
  func.func @transform_3(%arg0: i32) -> (i32, i32) {
    %c0_i32 = arith.constant 0 : i32
    %c0_i32_0 = arith.constant 0 : i32
    %c0_i32_1 = arith.constant 0 : i32
    return %c0_i32, %c0_i32_0 : i32, i32
  }
  func.func @transform_4(%arg0: i32) -> (i32, i32) {
    %c0_i32 = arith.constant 0 : i32
    %c0_i32_0 = arith.constant 0 : i32
    %c0_i32_1 = arith.constant 0 : i32
    return %c0_i32, %c0_i32_0 : i32, i32
  }
  func.func @transform_5(%arg0: i32) -> (i32, i32) {
    %c0_i32 = arith.constant 0 : i32
    %c0_i32_0 = arith.constant 0 : i32
    %c0_i32_1 = arith.constant 0 : i32
    return %c0_i32, %c0_i32_0 : i32, i32
  }
  func.func @transform_6(%arg0: i32) -> (i32, i32, i32) {
    %c0_i32 = arith.constant 0 : i32
    %c0_i32_0 = arith.constant 0 : i32
    %c0_i32_1 = arith.constant 0 : i32
    return %arg0, %c0_i32, %c0_i32_0 : i32, i32, i32
  }
}

</mosaic_0001>

<llo_original>
// kernel: tpu_custom_call.1
$region0: #{tpu_custom_call.1}
  #allocation0 [shape = 'u32[]', space=smem, size = 0x4, offset = 0x4, fixed_abs, tag = 'smem constant byte address 0x4 - core index']
  #allocation1 [shape = 'u32[144,128]{1,0:T(1,128)}', space=vmem, size = 0x12000, scoped, tag = 'internal scratch']
  %s0 = inlined_call_operand.hbm [shape: f32[16,16], index: 0, kind: input, shape index: {}]
  %s1 = inlined_call_operand.hbm [shape: f32[2,16,128], index: 1, kind: input, shape index: {}]
  %s2 = inlined_call_operand.hbm [shape: f32[2,16,128], index: 2, kind: input, shape index: {}]
  %s3 = inlined_call_operand.hbm [shape: f32[128,384], index: 3, kind: input, shape index: {}]
  %s4 = inlined_call_operand.hbm [shape: f32[128,384], index: 4, kind: input, shape index: {}]
  %s5 = inlined_call_operand.hbm [shape: f32[256,128], index: 5, kind: input, shape index: {}]
  %s6 = inlined_call_operand.hbm [shape: f32[2,16,128], index: 6, kind: output, shape index: {}]
  %s7 = sld [smem:[#allocation0]]
  $region81: #{tpu_custom_call.1} parent=0
    _
  %s9 = ssub.s32 1, %s7
  %s10 = scalar_select 0, %s9, %s7
  $region1: #{tpu_custom_call.1} parent=0
    #allocation2 [shape = 'u8[8192]{0}', space=vmem, size = 0x2000, scoped, tag = 'input window, operand 0, single buffered']
    #allocation3 [shape = 's32[2]{0}', space=sflag, size = 0x8, scoped, tag = 'scoped memory for tpu_custom_call.1']
    #allocation4 [shape = 's32[2]{0}', space=sflag, size = 0x8, scoped, tag = 'scoped memory for tpu_custom_call.1']
    #allocation5 [shape = 'u8[16384]{0}', space=vmem, size = 0x4000, scoped, tag = 'input window, operand 1']
    #allocation6 [shape = 's32[2]{0}', space=sflag, size = 0x8, scoped, tag = 'scoped memory for tpu_custom_call.1']
    #allocation7 [shape = 'u8[16384]{0}', space=vmem, size = 0x4000, scoped, tag = 'input window, operand 2']
    #allocation8 [shape = 'u8[196608]{0}', space=vmem, size = 0x30000, scoped, tag = 'input window, operand 3, single buffered']
    #allocation9 [shape = 's32[1]{0}', space=sflag, size = 0x4, scoped, tag = 'scoped memory for tpu_custom_call.1']
    #allocation10 [shape = 'u8[196608]{0}', space=vmem, size = 0x30000, scoped, tag = 'input window, operand 4, single buffered']
    #allocation11 [shape = 'u8[131072]{0}', space=vmem, size = 0x20000, scoped, tag = 'input window, operand 5, single buffered']
    #allocation12 [shape = 's32[1]{0}', space=sflag, size = 0x4, scoped, tag = 'scoped memory for tpu_custom_call.1']
    #allocation13 [shape = 'u8[16384]{0}', space=vmem, size = 0x4000, scoped, tag = 'output window, operand 0']
    %11 = vsyncpa [#allocation3], 0
    %12 = vsyncpa [#allocation6], 0
    %s13 = scalar_lea.sflag [#allocation6], 1
    %14 = vsyncpa %s13, 0
    %15 = vsyncpa [#allocation9], 0
    %16 = vsyncpa [#allocation12], 0
    %17 = vsyncpa [#allocation4], 0
    %s18 = scalar_lea.sflag [#allocation4], 1
    %19 = vsyncpa %s18, 0
    loop: start=0, step=1, limit=4
    $region2: #{tpu_custom_call.1} parent=1 // loop_pre_header
      _
    $region3: #{tpu_custom_call.1} parent=1 // loop_header
      %s21 = sphi 0, %s25
      %p22 = scmp.ge.s32.totalorder %s21, 4
      %s29 = sphi 0, %s29
      %s31 = sphi 0, %s29
      %s32 = sphi 0, %s31
      %s46 = sphi 0, %s32
      %s52 = sphi 0, %s54
      %s55 = sphi 0, %s52
      %s56 = sphi 0, %s55
      %s72 = sphi 0, %s56
      %s78 = sphi 0, %s80
      %s81 = sphi 0, %s78
      %s82 = sphi 0, %s81
      %s98 = sphi 0, %s82
      %s102 = sphi 0, %s102
      %s104 = sphi 0, %s102
      %s105 = sphi 0, %s104
      %s119 = sphi 0, %s105
      %s123 = sphi 0, %s123
      %s125 = sphi 0, %s123
      %s126 = sphi 0, %s125
      %s140 = sphi 0, %s126
      %s144 = sphi 0, %s144
      %s146 = sphi 0, %s144
      %s147 = sphi 0, %s146
      %s161 = sphi 0, %s147
      %s167 = sphi 0, %s169
      %s170 = sphi 0, %s167
      %s171 = sphi 0, %s170
      %s187 = sphi 0, %s171
    $region4: #{tpu_custom_call.1} parent=1 // loop_header_branch
      %24 = sbr.rel (%p22) target = $region8
    $region5: #{tpu_custom_call.1} parent=1 // loop_body
      %s26 = ssub.s32 %s21, 1
      %s27 = ssub.s32 %s21, 2
      %s28 = sadd.s32 %s21, 1
      %s30 = sadd.s32 %s29, 1
      %p33 = scmp.eq.s32.totalorder %s21, 1
      %p34 = scmp.ne.s32.totalorder %s29, %s31
      %p35 = scmp.eq.s32.totalorder %s21, 0
      %p36 = por %p34, %p35
      %p37 = scmp.ne.s32.totalorder %s29, %s31
      %p38 = scmp.eq.s32.totalorder %s26, 1
      %p39 = por %p37, %p38
      %p40 = scmp.ne.s32.totalorder %s31, %s32
      %p41 = scmp.eq.s32.totalorder %s26, 0
      %p42 = por %p40, %p41
      %p43 = scmp.ne.s32.totalorder %s31, %s32
      %p44 = scmp.eq.s32.totalorder %s27, 1
      %p45 = por %p43, %p44
      %p47 = scmp.ne.s32.totalorder %s32, %s46
      %p48 = scmp.eq.s32.totalorder %s27, 0
      %p49 = por %p47, %p48
      %s50 = ssub.s32 %s21, %s28
      %p51 = scmp.eq.s32.totalorder %s50, 0
      %s53 = sadd.s32 %s52, 1
      %s54 = scalar_select %p51, %s52, %s53
      %p57 = pneg %p51
      %p58 = scmp.eq.s32.totalorder %s21, 1
      %p59 = por %p57, %p58
      %p60 = scmp.ne.s32.totalorder %s52, %s55
      %p61 = scmp.eq.s32.totalorder %s21, 0
      %p62 = por %p60, %p61
      %p63 = scmp.ne.s32.totalorder %s52, %s55
      %p64 = scmp.eq.s32.totalorder %s26, 1
      %p65 = por %p63, %p64
      %p66 = scmp.ne.s32.totalorder %s55, %s56
      %p67 = scmp.eq.s32.totalorder %s26, 0
      %p68 = por %p66, %p67
      %p69 = scmp.ne.s32.totalorder %s55, %s56
      %p70 = scmp.eq.s32.totalorder %s27, 1
      %p71 = por %p69, %p70
      %p73 = scmp.ne.s32.totalorder %s56, %s72
      %p74 = scmp.eq.s32.totalorder %s27, 0
      %p75 = por %p73, %p74
      %s76 = ssub.s32 %s21, %s28
      %p77 = scmp.eq.s32.totalorder %s76, 0
      %s79 = sadd.s32 %s78, 1
      %s80 = scalar_select %p77, %s78, %s79
      %p83 = pneg %p77
      %p84 = scmp.eq.s32.totalorder %s21, 1
      %p85 = por %p83, %p84
      %p86 = scmp.ne.s32.totalorder %s78, %s81
      %p87 = scmp.eq.s32.totalorder %s21, 0
      %p88 = por %p86, %p87
      %p89 = scmp.ne.s32.totalorder %s78, %s81
      %p90 = scmp.eq.s32.totalorder %s26, 1
      %p91 = por %p89, %p90
      %p92 = scmp.ne.s32.totalorder %s81, %s82
      %p93 = scmp.eq.s32.totalorder %s26, 0
      %p94 = por %p92, %p93
      %p95 = scmp.ne.s32.totalorder %s81, %s82
      %p96 = scmp.eq.s32.totalorder %s27, 1
      %p97 = por %p95, %p96
      %p99 = scmp.ne.s32.totalorder %s82, %s98
      %p100 = scmp.eq.s32.totalorder %s27, 0
      %p101 = por %p99, %p100
      %s103 = sadd.s32 %s102, 1
      %p106 = scmp.eq.s32.totalorder %s21, 1
      %p107 = scmp.ne.s32.totalorder %s102, %s104
      %p108 = scmp.eq.s32.totalorder %s21, 0
      %p109 = por %p107, %p108
      %p110 = scmp.ne.s32.totalorder %s102, %s104
      %p111 = scmp.eq.s32.totalorder %s26, 1
      %p112 = por %p110, %p111
      %p113 = scmp.ne.s32.totalorder %s104, %s105
      %p114 = scmp.eq.s32.totalorder %s26, 0
      %p115 = por %p113, %p114
      %p116 = scmp.ne.s32.totalorder %s104, %s105
      %p117 = scmp.eq.s32.totalorder %s27, 1
      %p118 = por %p116, %p117
      %p120 = scmp.ne.s32.totalorder %s105, %s119
      %p121 = scmp.eq.s32.totalorder %s27, 0
      %p122 = por %p120, %p121
      %s124 = sadd.s32 %s123, 1
      %p127 = scmp.eq.s32.totalorder %s21, 1
      %p128 = scmp.ne.s32.totalorder %s123, %s125
      %p129 = scmp.eq.s32.totalorder %s21, 0
      %p130 = por %p128, %p129
      %p131 = scmp.ne.s32.totalorder %s123, %s125
      %p132 = scmp.eq.s32.totalorder %s26, 1
      %p133 = por %p131, %p132
      %p134 = scmp.ne.s32.totalorder %s125, %s126
      %p135 = scmp.eq.s32.totalorder %s26, 0
      %p136 = por %p134, %p135
      %p137 = scmp.ne.s32.totalorder %s125, %s126
      %p138 = scmp.eq.s32.totalorder %s27, 1
      %p139 = por %p137, %p138
      %p141 = scmp.ne.s32.totalorder %s126, %s140
      %p142 = scmp.eq.s32.totalorder %s27, 0
      %p143 = por %p141, %p142
      %s145 = sadd.s32 %s144, 1
      %p148 = scmp.eq.s32.totalorder %s21, 1
      %p149 = scmp.ne.s32.totalorder %s144, %s146
      %p150 = scmp.eq.s32.totalorder %s21, 0
      %p151 = por %p149, %p150
      %p152 = scmp.ne.s32.totalorder %s144, %s146
      %p153 = scmp.eq.s32.totalorder %s26, 1
      %p154 = por %p152, %p153
      %p155 = scmp.ne.s32.totalorder %s146, %s147
      %p156 = scmp.eq.s32.totalorder %s26, 0
      %p157 = por %p155, %p156
      %p158 = scmp.ne.s32.totalorder %s146, %s147
      %p159 = scmp.eq.s32.totalorder %s27, 1
      %p160 = por %p158, %p159
      %p162 = scmp.ne.s32.totalorder %s147, %s161
      %p163 = scmp.eq.s32.totalorder %s27, 0
      %p164 = por %p162, %p163
      %s165 = ssub.s32 %s21, %s28
      %p166 = scmp.eq.s32.totalorder %s165, 0
      %s168 = sadd.s32 %s167, 1
      %s169 = scalar_select %p166, %s167, %s168
      %p172 = pneg %p166
      %p173 = scmp.eq.s32.totalorder %s21, 1
      %p174 = por %p172, %p173
      %p175 = scmp.ne.s32.totalorder %s167, %s170
      %p176 = scmp.eq.s32.totalorder %s21, 0
      %p177 = por %p175, %p176
      %p178 = scmp.ne.s32.totalorder %s167, %s170
      %p179 = scmp.eq.s32.totalorder %s26, 1
      %p180 = por %p178, %p179
      %p181 = scmp.ne.s32.totalorder %s170, %s171
      %p182 = scmp.eq.s32.totalorder %s26, 0
      %p183 = por %p181, %p182
      %p184 = scmp.ne.s32.totalorder %s170, %s171
      %p185 = scmp.eq.s32.totalorder %s27, 1
      %p186 = por %p184, %p185
      %p188 = scmp.ne.s32.totalorder %s171, %s187
      %p189 = scmp.eq.s32.totalorder %s27, 0
      %p190 = por %p188, %p189
      %p191 = scmp.le.s32.totalorder 1, %s21
      %p192 = scmp.lt.s32.totalorder %s21, 3
      %p193 = pnand %p191, %p192
      %p194 = pneg %p193
      // Predicated region
      $region9: #{tpu_custom_call.1} parent=5 // pred_check
        _
      $region10: #{tpu_custom_call.1} parent=5 // pred_check_branch
        %196 = sbr.rel (%p193) target = $region12
      $region11: #{tpu_custom_call.1} parent=5 // pred_region
        %s197 = ssub.s32 %s21, 1
        // Predicated region
        $region13: #{tpu_custom_call.1} parent=11 // pred_check
          %p198 = pneg %p42
        $region14: #{tpu_custom_call.1} parent=11 // pred_check_branch
          %200 = sbr.rel (%p198) target = $region16
        $region15: #{tpu_custom_call.1} parent=11 // pred_region
          %s202 = ssub.s32 256, 256
          %203 = vsyncadd [#allocation3], %s202
          %s204 = sshll.u32 [#allocation2], 4
          %s205 = int_to_ptr.vmem [resolvable:$true] %s204
          %210 = dma.hbm_to_vmem [thread:$0]  %s0, 256, %s205, [#allocation3], 128, 128, 8
        $region16: #{tpu_custom_call.1} parent=11 // pred_fallthru
          _
        // Predicated region
        $region17: #{tpu_custom_call.1} parent=11 // pred_check
          %p211 = pneg %p115
        $region18: #{tpu_custom_call.1} parent=11 // pred_check_branch
          %213 = sbr.rel (%p211) target = $region20
        $region19: #{tpu_custom_call.1} parent=11 // pred_region
          %s215 = ssub.s32 6144, 6144
          %216 = vsyncadd [#allocation9], %s215
          %s217 = sshll.u32 [#allocation8], 4
          %s218 = int_to_ptr.vmem [resolvable:$true] %s217
          %223 = dma.hbm_to_vmem [thread:$0]  %s3, 6144, %s218, [#allocation9], 384, 384, 24
        $region20: #{tpu_custom_call.1} parent=11 // pred_fallthru
          _
        // Predicated region
        $region21: #{tpu_custom_call.1} parent=11 // pred_check
          %p224 = pneg %p136
        $region22: #{tpu_custom_call.1} parent=11 // pred_check_branch
          %226 = sbr.rel (%p224) target = $region24
        $region23: #{tpu_custom_call.1} parent=11 // pred_region
          %s228 = ssub.s32 6144, 6144
          %229 = vsyncadd [#allocation9], %s228
          %s230 = sshll.u32 [#allocation10], 4
          %s231 = int_to_ptr.vmem [resolvable:$true] %s230
          %236 = dma.hbm_to_vmem [thread:$0]  %s4, 6144, %s231, [#allocation9], 384, 384, 24
        $region24: #{tpu_custom_call.1} parent=11 // pred_fallthru
          _
        // Predicated region
        $region25: #{tpu_custom_call.1} parent=11 // pred_check
          %p237 = pneg %p157
        $region26: #{tpu_custom_call.1} parent=11 // pred_check_branch
          %239 = sbr.rel (%p237) target = $region28
        $region27: #{tpu_custom_call.1} parent=11 // pred_region
          %s241 = ssub.s32 4096, 4096
          %242 = vsyncadd [#allocation12], %s241
          %s243 = sshll.u32 [#allocation11], 4
          %s244 = int_to_ptr.vmem [resolvable:$true] %s243
          %249 = dma.hbm_to_vmem [thread:$0]  %s5, 4096, %s244, [#allocation12], 128, 128, 8
        $region28: #{tpu_custom_call.1} parent=11 // pred_fallthru
          _
      $region12: #{tpu_custom_call.1} parent=5 // pred_fallthru
        _
      %p250 = scmp.lt.s32.totalorder %s21, 2
      // Predicated region
      $region29: #{tpu_custom_call.1} parent=5 // pred_check
        %p251 = pneg %p250
      $region30: #{tpu_custom_call.1} parent=5 // pred_check_branch
        %253 = sbr.rel (%p251) target = $region32
      $region31: #{tpu_custom_call.1} parent=5 // pred_region
        // Predicated region
        $region33: #{tpu_custom_call.1} parent=31 // pred_check
          %p254 = pneg %p62
        $region34: #{tpu_custom_call.1} parent=31 // pred_check_branch
          %256 = sbr.rel (%p254) target = $region36
        $region35: #{tpu_custom_call.1} parent=31 // pred_region
          %s257 = sand.u32 %s21, 1
          %s258 = scalar_lea.sflag [#allocation6], %s257
          %s259 = sand.u32 %s52, 1
          %s260 = smul.addr %s259, 16
          %s261 = scalar_lea.vmem [#allocation5], %s260
          %s263 = ssub.s32 256, 256
          %264 = vsyncadd %s258, %s263
          %s265 = smul.addr %s21, 2
          %s266 = smul.addr %s265, 128
          %s267 = scalar_lea.hbm %s1, %s266
          %s268 = sshll.u32 %s261, 4
          %s269 = int_to_ptr.vmem [resolvable:$true] %s268
          %274 = dma.hbm_to_vmem [thread:$0]  %s267, 256, %s269, %s258, 128, 128, 8
        $region36: #{tpu_custom_call.1} parent=31 // pred_fallthru
          _
        // Predicated region
        $region37: #{tpu_custom_call.1} parent=31 // pred_check
          %p275 = pneg %p88
        $region38: #{tpu_custom_call.1} parent=31 // pred_check_branch
          %277 = sbr.rel (%p275) target = $region40
        $region39: #{tpu_custom_call.1} parent=31 // pred_region
          %s278 = sand.u32 %s21, 1
          %s279 = scalar_lea.sflag [#allocation6], %s278
          %s280 = sand.u32 %s78, 1
          %s281 = smul.addr %s280, 16
          %s282 = scalar_lea.vmem [#allocation7], %s281
          %s284 = ssub.s32 256, 256
          %285 = vsyncadd %s279, %s284
          %s286 = smul.addr %s21, 2
          %s287 = smul.addr %s286, 128
          %s288 = scalar_lea.hbm %s2, %s287
          %s289 = sshll.u32 %s282, 4
          %s290 = int_to_ptr.vmem [resolvable:$true] %s289
          %295 = dma.hbm_to_vmem [thread:$0]  %s288, 256, %s290, %s279, 128, 128, 8
        $region40: #{tpu_custom_call.1} parent=31 // pred_fallthru
          _
      $region32: #{tpu_custom_call.1} parent=5 // pred_fallthru
        _
      %p296 = scmp.le.s32.totalorder 1, %s21
      %p297 = scmp.lt.s32.totalorder %s21, 3
      %p298 = pnand %p296, %p297
      %p299 = pneg %p298
      // Predicated region
      $region41: #{tpu_custom_call.1} parent=5 // pred_check
        _
      $region42: #{tpu_custom_call.1} parent=5 // pred_check_branch
        %301 = sbr.rel (%p298) target = $region44
      $region43: #{tpu_custom_call.1} parent=5 // pred_region
        %s302 = ssub.s32 %s21, 1
        // Predicated region
        $region45: #{tpu_custom_call.1} parent=43 // pred_check
          %p303 = pneg %p42
        $region46: #{tpu_custom_call.1} parent=43 // pred_check_branch
          %305 = sbr.rel (%p303) target = $region48
        $region47: #{tpu_custom_call.1} parent=43 // pred_region
          %306 = dma.done [#allocation3], 256
        $region48: #{tpu_custom_call.1} parent=43 // pred_fallthru
          _
        %s307 = sand.u32 %s26, 1
        %s308 = scalar_lea.sflag [#allocation6], %s307
        %s309 = sand.u32 %s55, 1
        %s310 = smul.addr %s309, 16
        %s311 = scalar_lea.vmem [#allocation5], %s310
        // Predicated region
        $region49: #{tpu_custom_call.1} parent=43 // pred_check
          %p312 = pneg %p68
        $region50: #{tpu_custom_call.1} parent=43 // pred_check_branch
          %314 = sbr.rel (%p312) target = $region52
        $region51: #{tpu_custom_call.1} parent=43 // pred_region
          %315 = dma.done %s308, 256
        $region52: #{tpu_custom_call.1} parent=43 // pred_fallthru
          _
        %s316 = sand.u32 %s26, 1
        %s317 = scalar_lea.sflag [#allocation6], %s316
        %s318 = sand.u32 %s81, 1
        %s319 = smul.addr %s318, 16
        %s320 = scalar_lea.vmem [#allocation7], %s319
        // Predicated region
        $region53: #{tpu_custom_call.1} parent=43 // pred_check
          %p321 = pneg %p94
        $region54: #{tpu_custom_call.1} parent=43 // pred_check_branch
          %323 = sbr.rel (%p321) target = $region56
        $region55: #{tpu_custom_call.1} parent=43 // pred_region
          %324 = dma.done %s317, 256
        $region56: #{tpu_custom_call.1} parent=43 // pred_fallthru
          _
        // Predicated region
        $region57: #{tpu_custom_call.1} parent=43 // pred_check
          %p325 = pneg %p115
        $region58: #{tpu_custom_call.1} parent=43 // pred_check_branch
          %327 = sbr.rel (%p325) target = $region60
        $region59: #{tpu_custom_call.1} parent=43 // pred_region
          %328 = dma.done [#allocation9], 6144
        $region60: #{tpu_custom_call.1} parent=43 // pred_fallthru
          _
        // Predicated region
        $region61: #{tpu_custom_call.1} parent=43 // pred_check
          %p329 = pneg %p136
        $region62: #{tpu_custom_call.1} parent=43 // pred_check_branch
          %331 = sbr.rel (%p329) target = $region64
        $region63: #{tpu_custom_call.1} parent=43 // pred_region
          %332 = dma.done [#allocation9], 6144
        $region64: #{tpu_custom_call.1} parent=43 // pred_fallthru
          _
        // Predicated region
        $region65: #{tpu_custom_call.1} parent=43 // pred_check
          %p333 = pneg %p157
        $region66: #{tpu_custom_call.1} parent=43 // pred_check_branch
          %335 = sbr.rel (%p333) target = $region68
        $region67: #{tpu_custom_call.1} parent=43 // pred_region
          %336 = dma.done [#allocation12], 4096
        $region68: #{tpu_custom_call.1} parent=43 // pred_fallthru
          _
        %p337 = pneg %p42
        %p338 = pneg %p39
        %s339 = sand.u32 %s26, 1
        %s340 = scalar_lea.sflag [#allocation6], %s339
        %s341 = sand.u32 %s55, 1
        %s342 = smul.addr %s341, 16
        %s343 = scalar_lea.vmem [#allocation5], %s342
        %p344 = pneg %p68
        %p345 = pneg %p65
        %s346 = sand.u32 %s26, 1
        %s347 = scalar_lea.sflag [#allocation6], %s346
        %s348 = sand.u32 %s81, 1
        %s349 = smul.addr %s348, 16
        %s350 = scalar_lea.vmem [#allocation7], %s349
        %p351 = pneg %p94
        %p352 = pneg %p91
        %p353 = pneg %p115
        %p354 = pneg %p112
        %p355 = pneg %p136
        %p356 = pneg %p133
        %p357 = pneg %p157
        %p358 = pneg %p154
        %p359 = pneg %p183
        %p360 = pneg %p180
        %s361 = sand.u32 %s170, 1
        %s362 = scalar_lea.sflag [#allocation4], %s361
        %s363 = sand.u32 %s170, 1
        %s364 = smul.addr %s363, 16
        %s365 = scalar_lea.vmem [#allocation13], %s364
        %v366 = vld [vmem:[%s311] sm:$0xff]
        %v367 = vld [vmem:[%s311 + $0x8] sm:$0xff]
        %v368 = vld [vmem:[%s320] sm:$0xff]
        %v369 = vld [vmem:[%s320 + $0x8] sm:$0xff]
        %370 = vadd.xlane.f32.xlu0 %v366
        %v371 = vpop.xlane.xlu0 %370
        %372 = vadd.xlane.f32.xlu0 %v367
        %v373 = vpop.xlane.xlu0 %372
        %v374 = vrcp.pop 128.0
        %v375 = vmul.f32 %v371, %v374
        %v376 = vmul.f32 %v373, %v374
        %v377 = vsub.f32 %v366, %v375
        %v378 = vsub.f32 %v367, %v376
        %v379 = vmul.f32 %v377, %v377
        %v380 = vmul.f32 %v378, %v378
        %381 = vadd.xlane.f32.xlu0 %v379
        %v382 = vpop.xlane.xlu0 %381
        %383 = vadd.xlane.f32.xlu0 %v380
        %v384 = vpop.xlane.xlu0 %383
        %v385 = vmul.f32 %v382, %v374
        %v386 = vmul.f32 %v384, %v374
        %v387 = vadd.f32 %v385, 1e-05
        %v388 = vadd.f32 %v386, 1e-05
        %v389 = vrsqrt.pop %v387
        %v390 = vrsqrt.pop %v388
        %v391 = vmul.f32 %v377, %v389
        %v392 = vmul.f32 %v378, %v390
        %393 = vadd.xlane.f32.xlu0 %v368
        %v394 = vpop.xlane.xlu0 %393
        %395 = vadd.xlane.f32.xlu0 %v369
        %v396 = vpop.xlane.xlu0 %395
        %v397 = vmul.f32 %v394, %v374
        %v398 = vmul.f32 %v396, %v374
        %v399 = vsub.f32 %v368, %v397
        %v400 = vsub.f32 %v369, %v398
        %v401 = vmul.f32 %v399, %v399
        %v402 = vmul.f32 %v400, %v400
        %403 = vadd.xlane.f32.xlu0 %v401
        %v404 = vpop.xlane.xlu0 %403
        %405 = vadd.xlane.f32.xlu0 %v402
        %v406 = vpop.xlane.xlu0 %405
        %v407 = vmul.f32 %v404, %v374
        %v408 = vmul.f32 %v406, %v374
        %v409 = vadd.f32 %v407, 1e-05
        %v410 = vadd.f32 %v408, 1e-05
        %v411 = vrsqrt.pop %v409
        %v412 = vrsqrt.pop %v410
        %v413 = vmul.f32 %v399, %v411
        %v414 = vmul.f32 %v400, %v412
        %v415 = vld [vmem:[#allocation8] sm:$0xff]
        %v416 = vld [vmem:[#allocation8 + $0x8] sm:$0xff]
        %v417 = vld [vmem:[#allocation8 + $0x10] sm:$0xff]
        %v418 = vld [vmem:[#allocation8 + $0x18] sm:$0xff]
        %v419 = vld [vmem:[#allocation8 + $0x20] sm:$0xff]
        %v420 = vld [vmem:[#allocation8 + $0x28] sm:$0xff]
        %v421 = vld [vmem:[#allocation8 + $0x30] sm:$0xff]
        %v422 = vld [vmem:[#allocation8 + $0x38] sm:$0xff]
        %v423 = vld [vmem:[#allocation8 + $0x40] sm:$0xff]
        %v424 = vld [vmem:[#allocation8 + $0x48] sm:$0xff]
        %v425 = vld [vmem:[#allocation8 + $0x50] sm:$0xff]
        %v426 = vld [vmem:[#allocation8 + $0x58] sm:$0xff]
        %v427 = vld [vmem:[#allocation8 + $0x60] sm:$0xff]
        %v428 = vld [vmem:[#allocation8 + $0x68] sm:$0xff]
        %v429 = vld [vmem:[#allocation8 + $0x70] sm:$0xff]
        %v430 = vld [vmem:[#allocation8 + $0x78] sm:$0xff]
        %v431 = vld [vmem:[#allocation8 + $0x80] sm:$0xff]
        %v432 = vld [vmem:[#allocation8 + $0x88] sm:$0xff]
        %v433 = vld [vmem:[#allocation8 + $0x90] sm:$0xff]
        %v434 = vld [vmem:[#allocation8 + $0x98] sm:$0xff]
        %v435 = vld [vmem:[#allocation8 + $0xa0] sm:$0xff]
        %v436 = vld [vmem:[#allocation8 + $0xa8] sm:$0xff]
        %v437 = vld [vmem:[#allocation8 + $0xb0] sm:$0xff]
        %v438 = vld [vmem:[#allocation8 + $0xb8] sm:$0xff]
        %v439 = vld [vmem:[#allocation8 + $0xc0] sm:$0xff]
        %v440 = vld [vmem:[#allocation8 + $0xc8] sm:$0xff]
        %v441 = vld [vmem:[#allocation8 + $0xd0] sm:$0xff]
        %v442 = vld [vmem:[#allocation8 + $0xd8] sm:$0xff]
        %v443 = vld [vmem:[#allocation8 + $0xe0] sm:$0xff]
        %v444 = vld [vmem:[#allocation8 + $0xe8] sm:$0xff]
        %v445 = vld [vmem:[#allocation8 + $0xf0] sm:$0xff]
        %v446 = vld [vmem:[#allocation8 + $0xf8] sm:$0xff]
        %v447 = vld [vmem:[#allocation8 + $0x100] sm:$0xff]
        %v448 = vld [vmem:[#allocation8 + $0x108] sm:$0xff]
        %v449 = vld [vmem:[#allocation8 + $0x110] sm:$0xff]
        %v450 = vld [vmem:[#allocation8 + $0x118] sm:$0xff]
        %v451 = vld [vmem:[#allocation8 + $0x120] sm:$0xff]
        %v452 = vld [vmem:[#allocation8 + $0x128] sm:$0xff]
        %v453 = vld [vmem:[#allocation8 + $0x130] sm:$0xff]
        %v454 = vld [vmem:[#allocation8 + $0x138] sm:$0xff]
        %v455 = vld [vmem:[#allocation8 + $0x140] sm:$0xff]
        %v456 = vld [vmem:[#allocation8 + $0x148] sm:$0xff]
        %v457 = vld [vmem:[#allocation8 + $0x150] sm:$0xff]
        %v458 = vld [vmem:[#allocation8 + $0x158] sm:$0xff]
        %v459 = vld [vmem:[#allocation8 + $0x160] sm:$0xff]
        %v460 = vld [vmem:[#allocation8 + $0x168] sm:$0xff]
        %v461 = vld [vmem:[#allocation8 + $0x170] sm:$0xff]
        %v462 = vld [vmem:[#allocation8 + $0x178] sm:$0xff]
        %463 = vmatprep.subr.mxu0 %v416
        %464 = vmatpush1.msra.mxu0 %v415
        %465 = vmatprep.subr.mxu0 %v419
        %466 = vmatpush1.msra.mxu0 %v418
        %467 = vmatprep.subr.mxu0 %v422
        %468 = vmatpush1.msra.mxu0 %v421
        %469 = vmatprep.subr.mxu0 %v425
        %470 = vmatpush1.msra.mxu0 %v424
        %471 = vmatprep.subr.mxu0 %v428
        %472 = vmatpush1.msra.mxu0 %v427
        %473 = vmatprep.subr.mxu0 %v431
        %474 = vmatpush1.msra.mxu0 %v430
        %475 = vmatprep.subr.mxu0 %v434
        %476 = vmatpush1.msra.mxu0 %v433
        %477 = vmatprep.subr.mxu0 %v437
        %478 = vmatpush1.msra.mxu0 %v436
        %479 = vmatprep.subr.mxu0 %v440
        %480 = vmatpush1.msra.mxu0 %v439
        %481 = vmatprep.subr.mxu0 %v443
        %482 = vmatpush1.msra.mxu0 %v442
        %483 = vmatprep.subr.mxu0 %v446
        %484 = vmatpush1.msra.mxu0 %v445
        %485 = vmatprep.subr.mxu0 %v449
        %486 = vmatpush1.msra.mxu0 %v448
        %487 = vmatprep.subr.mxu0 %v452
        %488 = vmatpush1.msra.mxu0 %v451
        %489 = vmatprep.subr.mxu0 %v455
        %490 = vmatpush1.msra.mxu0 %v454
        %491 = vmatprep.subr.mxu0 %v458
        %492 = vmatpush1.msra.mxu0 %v457
        %493 = vmatprep.subr.mxu0 %v461
        %494 = vmatpush1.msra.mxu0 %v460
        %495 = vmatprep.subr.mxu0 0.0
        %496 = vmatpush1.msra.mxu0 0.0
        %497 = vmatprep.subr.mxu0 0.0
        %498 = vmatpush1.msra.mxu0 0.0
        %499 = vmatprep.subr.mxu0 0.0
        %500 = vmatpush1.msra.mxu0 0.0
        %501 = vmatprep.subr.mxu0 0.0
        %502 = vmatpush1.msra.mxu0 0.0
        %503 = vmatprep.subr.mxu0 0.0
        %504 = vmatpush1.msra.mxu0 0.0
        %505 = vmatprep.subr.mxu0 0.0
        %506 = vmatpush1.msra.mxu0 0.0
        %507 = vmatprep.subr.mxu0 0.0
        %508 = vmatpush1.msra.mxu0 0.0
        %509 = vmatprep.subr.mxu0 0.0
        %510 = vmatpush1.msra.mxu0 0.0
        %511 = vmatprep.subr.mxu0 0.0
        %512 = vmatpush1.msra.mxu0 0.0
        %513 = vmatprep.subr.mxu0 0.0
        %514 = vmatpush1.msra.mxu0 0.0
        %515 = vmatprep.subr.mxu0 0.0
        %516 = vmatpush1.msra.mxu0 0.0
        %517 = vmatprep.subr.mxu0 0.0
        %518 = vmatpush1.msra.mxu0 0.0
        %519 = vmatprep.subr.mxu0 0.0
        %520 = vmatpush1.msra.mxu0 0.0
        %521 = vmatprep.subr.mxu0 0.0
        %522 = vmatpush1.msra.mxu0 0.0
        %523 = vmatprep.subr.mxu0 0.0
        %524 = vmatpush1.msra.mxu0 0.0
        %525 = vmatprep.subr.mxu0 0.0
        %526 = vmatpush1.msra.mxu0 0.0
        %527 = vmatprep.mubr.f32.mxu0 0.0
        %528 = vmatmul.mubr.f32.gmra.mrb[0].mxu0 %v391
        %v529 = vpop.f32.mrb[0].mxu0
        %v530 = vadd.f32 0.0, %v529
        %v531 = vpop.f32.mrb[0].mxu0
        %v532 = vadd.f32 0.0, %v531
        %533 = vmatprep.mubr.f32.mxu0 0.0
        %534 = vmatmul.mubr.f32.gmra.mrb[0].mxu0 %v392
        %v535 = vpop.f32.mrb[0].mxu0
        %v536 = vadd.f32 0.0, %v535
        %v537 = vpop.f32.mrb[0].mxu0
        %v538 = vadd.f32 0.0, %v537
        %539 = vdwg.mxu0
        %540 = vmatprep.subr.mxu0 0.0
        %541 = vmatpush1.msra.mxu0 %v417
        %542 = vmatprep.subr.mxu0 0.0
        %543 = vmatpush1.msra.mxu0 %v420
        %544 = vmatprep.subr.mxu0 0.0
        %545 = vmatpush1.msra.mxu0 %v423
        %546 = vmatprep.subr.mxu0 0.0
        %547 = vmatpush1.msra.mxu0 %v426
        %548 = vmatprep.subr.mxu0 0.0
        %549 = vmatpush1.msra.mxu0 %v429
        %550 = vmatprep.subr.mxu0 0.0
        %551 = vmatpush1.msra.mxu0 %v432
        %552 = vmatprep.subr.mxu0 0.0
        %553 = vmatpush1.msra.mxu0 %v435
        %554 = vmatprep.subr.mxu0 0.0
        %555 = vmatpush1.msra.mxu0 %v438
        %556 = vmatprep.subr.mxu0 0.0
        %557 = vmatpush1.msra.mxu0 %v441
        %558 = vmatprep.subr.mxu0 0.0
        %559 = vmatpush1.msra.mxu0 %v444
        %560 = vmatprep.subr.mxu0 0.0
        %561 = vmatpush1.msra.mxu0 %v447
        %562 = vmatprep.subr.mxu0 0.0
        %563 = vmatpush1.msra.mxu0 %v450
        %564 = vmatprep.subr.mxu0 0.0
        %565 = vmatpush1.msra.mxu0 %v453
        %566 = vmatprep.subr.mxu0 0.0
        %567 = vmatpush1.msra.mxu0 %v456
        %568 = vmatprep.subr.mxu0 0.0
        %569 = vmatpush1.msra.mxu0 %v459
        %570 = vmatprep.subr.mxu0 0.0
        %571 = vmatpush1.msra.mxu0 %v462
        %572 = vmatprep.subr.mxu0 0.0
        %573 = vmatpush1.msra.mxu0 0.0
        %574 = vmatprep.subr.mxu0 0.0
        %575 = vmatpush1.msra.mxu0 0.0
        %576 = vmatprep.subr.mxu0 0.0
        %577 = vmatpush1.msra.mxu0 0.0
        %578 = vmatprep.subr.mxu0 0.0
        %579 = vmatpush1.msra.mxu0 0.0
        %580 = vmatprep.subr.mxu0 0.0
        %581 = vmatpush1.msra.mxu0 0.0
        %582 = vmatprep.subr.mxu0 0.0
        %583 = vmatpush1.msra.mxu0 0.0
        %584 = vmatprep.subr.mxu0 0.0
        %585 = vmatpush1.msra.mxu0 0.0
        %586 = vmatprep.subr.mxu0 0.0
        %587 = vmatpush1.msra.mxu0 0.0
        %588 = vmatprep.subr.mxu0 0.0
        %589 = vmatpush1.msra.mxu0 0.0
        %590 = vmatprep.subr.mxu0 0.0
        %591 = vmatpush1.msra.mxu0 0.0
        %592 = vmatprep.subr.mxu0 0.0
        %593 = vmatpush1.msra.mxu0 0.0
        %594 = vmatprep.subr.mxu0 0.0
        %595 = vmatpush1.msra.mxu0 0.0
        %596 = vmatprep.subr.mxu0 0.0
        %597 = vmatpush1.msra.mxu0 0.0
        %598 = vmatprep.subr.mxu0 0.0
        %599 = vmatpush1.msra.mxu0 0.0
        %600 = vmatprep.subr.mxu0 0.0
        %601 = vmatpush1.msra.mxu0 0.0
        %602 = vmatprep.subr.mxu0 0.0
        %603 = vmatpush1.msra.mxu0 0.0
        %604 = vmatprep.mubr.f32.mxu0 0.0
        %605 = vmatmul.mubr.f32.gmra.mrb[0].mxu0 %v391
        %v606 = vpop.f32.mrb[0].mxu0
        %v607 = vadd.f32 0.0, %v606
        %v608 = vpop.f32.mrb[0].mxu0
        %609 = vmatprep.mubr.f32.mxu0 0.0
        %610 = vmatmul.mubr.f32.gmra.mrb[0].mxu0 %v392
        %v611 = vpop.f32.mrb[0].mxu0
        %v612 = vadd.f32 0.0, %v611
        %v613 = vpop.f32.mrb[0].mxu0
        %614 = vdwg.mxu0
        %v615 = vld [vmem:[#allocation10] sm:$0xff]
        %v616 = vld [vmem:[#allocation10 + $0x8] sm:$0xff]
        %v617 = vld [vmem:[#allocation10 + $0x10] sm:$0xff]
        %v618 = vld [vmem:[#allocation10 + $0x18] sm:$0xff]
        %v619 = vld [vmem:[#allocation10 + $0x20] sm:$0xff]
        %v620 = vld [vmem:[#allocation10 + $0x28] sm:$0xff]
        %v621 = vld [vmem:[#allocation10 + $0x30] sm:$0xff]
        %v622 = vld [vmem:[#allocation10 + $0x38] sm:$0xff]
        %v623 = vld [vmem:[#allocation10 + $0x40] sm:$0xff]
        %v624 = vld [vmem:[#allocation10 + $0x48] sm:$0xff]
        %v625 = vld [vmem:[#allocation10 + $0x50] sm:$0xff]
        %v626 = vld [vmem:[#allocation10 + $0x58] sm:$0xff]
        %v627 = vld [vmem:[#allocation10 + $0x60] sm:$0xff]
        %v628 = vld [vmem:[#allocation10 + $0x68] sm:$0xff]
        %v629 = vld [vmem:[#allocation10 + $0x70] sm:$0xff]
        %v630 = vld [vmem:[#allocation10 + $0x78] sm:$0xff]
        %v631 = vld [vmem:[#allocation10 + $0x80] sm:$0xff]
        %v632 = vld [vmem:[#allocation10 + $0x88] sm:$0xff]
        %v633 = vld [vmem:[#allocation10 + $0x90] sm:$0xff]
        %v634 = vld [vmem:[#allocation10 + $0x98] sm:$0xff]
        %v635 = vld [vmem:[#allocation10 + $0xa0] sm:$0xff]
        %v636 = vld [vmem:[#allocation10 + $0xa8] sm:$0xff]
        %v637 = vld [vmem:[#allocation10 + $0xb0] sm:$0xff]
        %v638 = vld [vmem:[#allocation10 + $0xb8] sm:$0xff]
        %v639 = vld [vmem:[#allocation10 + $0xc0] sm:$0xff]
        %v640 = vld [vmem:[#allocation10 + $0xc8] sm:$0xff]
        %v641 = vld [vmem:[#allocation10 + $0xd0] sm:$0xff]
        %v642 = vld [vmem:[#allocation10 + $0xd8] sm:$0xff]
        %v643 = vld [vmem:[#allocation10 + $0xe0] sm:$0xff]
        %v644 = vld [vmem:[#allocation10 + $0xe8] sm:$0xff]
        %v645 = vld [vmem:[#allocation10 + $0xf0] sm:$0xff]
        %v646 = vld [vmem:[#allocation10 + $0xf8] sm:$0xff]
        %v647 = vld [vmem:[#allocation10 + $0x100] sm:$0xff]
        %v648 = vld [vmem:[#allocation10 + $0x108] sm:$0xff]
        %v649 = vld [vmem:[#allocation10 + $0x110] sm:$0xff]
        %v650 = vld [vmem:[#allocation10 + $0x118] sm:$0xff]
        %v651 = vld [vmem:[#allocation10 + $0x120] sm:$0xff]
        %v652 = vld [vmem:[#allocation10 + $0x128] sm:$0xff]
        %v653 = vld [vmem:[#allocation10 + $0x130] sm:$0xff]
        %v654 = vld [vmem:[#allocation10 + $0x138] sm:$0xff]
        %v655 = vld [vmem:[#allocation10 + $0x140] sm:$0xff]
        %v656 = vld [vmem:[#allocation10 + $0x148] sm:$0xff]
        %v657 = vld [vmem:[#allocation10 + $0x150] sm:$0xff]
        %v658 = vld [vmem:[#allocation10 + $0x158] sm:$0xff]
        %v659 = vld [vmem:[#allocation10 + $0x160] sm:$0xff]
        %v660 = vld [vmem:[#allocation10 + $0x168] sm:$0xff]
        %v661 = vld [vmem:[#allocation10 + $0x170] sm:$0xff]
        %v662 = vld [vmem:[#allocation10 + $0x178] sm:$0xff]
        %663 = vmatprep.subr.mxu0 %v616
        %664 = vmatpush1.msra.mxu0 %v615
        %665 = vmatprep.subr.mxu0 %v619
        %666 = vmatpush1.msra.mxu0 %v618
        %667 = vmatprep.subr.mxu0 %v622
        %668 = vmatpush1.msra.mxu0 %v621
        %669 = vmatprep.subr.mxu0 %v625
        %670 = vmatpush1.msra.mxu0 %v624
        %671 = vmatprep.subr.mxu0 %v628
        %672 = vmatpush1.msra.mxu0 %v627
        %673 = vmatprep.subr.mxu0 %v631
        %674 = vmatpush1.msra.mxu0 %v630
        %675 = vmatprep.subr.mxu0 %v634
        %676 = vmatpush1.msra.mxu0 %v633
        %677 = vmatprep.subr.mxu0 %v637
        %678 = vmatpush1.msra.mxu0 %v636
        %679 = vmatprep.subr.mxu0 %v640
        %680 = vmatpush1.msra.mxu0 %v639
        %681 = vmatprep.subr.mxu0 %v643
        %682 = vmatpush1.msra.mxu0 %v642
        %683 = vmatprep.subr.mxu0 %v646
        %684 = vmatpush1.msra.mxu0 %v645
        %685 = vmatprep.subr.mxu0 %v649
        %686 = vmatpush1.msra.mxu0 %v648
        %687 = vmatprep.subr.mxu0 %v652
        %688 = vmatpush1.msra.mxu0 %v651
        %689 = vmatprep.subr.mxu0 %v655
        %690 = vmatpush1.msra.mxu0 %v654
        %691 = vmatprep.subr.mxu0 %v658
        %692 = vmatpush1.msra.mxu0 %v657
        %693 = vmatprep.subr.mxu0 %v661
        %694 = vmatpush1.msra.mxu0 %v660
        %695 = vmatprep.subr.mxu0 0.0
        %696 = vmatpush1.msra.mxu0 0.0
        %697 = vmatprep.subr.mxu0 0.0
        %698 = vmatpush1.msra.mxu0 0.0
        %699 = vmatprep.subr.mxu0 0.0
        %700 = vmatpush1.msra.mxu0 0.0
        %701 = vmatprep.subr.mxu0 0.0
        %702 = vmatpush1.msra.mxu0 0.0
        %703 = vmatprep.subr.mxu0 0.0
        %704 = vmatpush1.msra.mxu0 0.0
        %705 = vmatprep.subr.mxu0 0.0
        %706 = vmatpush1.msra.mxu0 0.0
        %707 = vmatprep.subr.mxu0 0.0
        %708 = vmatpush1.msra.mxu0 0.0
        %709 = vmatprep.subr.mxu0 0.0
        %710 = vmatpush1.msra.mxu0 0.0
        %711 = vmatprep.subr.mxu0 0.0
        %712 = vmatpush1.msra.mxu0 0.0
        %713 = vmatprep.subr.mxu0 0.0
        %714 = vmatpush1.msra.mxu0 0.0
        %715 = vmatprep.subr.mxu0 0.0
        %716 = vmatpush1.msra.mxu0 0.0
        %717 = vmatprep.subr.mxu0 0.0
        %718 = vmatpush1.msra.mxu0 0.0
        %719 = vmatprep.subr.mxu0 0.0
        %720 = vmatpush1.msra.mxu0 0.0
        %721 = vmatprep.subr.mxu0 0.0
        %722 = vmatpush1.msra.mxu0 0.0
        %723 = vmatprep.subr.mxu0 0.0
        %724 = vmatpush1.msra.mxu0 0.0
        %725 = vmatprep.subr.mxu0 0.0
        %726 = vmatpush1.msra.mxu0 0.0
        %727 = vmatprep.mubr.f32.mxu0 0.0
        %728 = vmatmul.mubr.f32.gmra.mrb[0].mxu0 %v413
        %v729 = vpop.f32.mrb[0].mxu0
        %v730 = vadd.f32 0.0, %v729
        %v731 = vpop.f32.mrb[0].mxu0
        %v732 = vadd.f32 0.0, %v731
        %733 = vmatprep.mubr.f32.mxu0 0.0
        %734 = vmatmul.mubr.f32.gmra.mrb[0].mxu0 %v414
        %v735 = vpop.f32.mrb[0].mxu0
        %v736 = vadd.f32 0.0, %v735
        %v737 = vpop.f32.mrb[0].mxu0
        %v738 = vadd.f32 0.0, %v737
        %739 = vdwg.mxu0
        %740 = vmatprep.subr.mxu0 0.0
        %741 = vmatpush1.msra.mxu0 %v617
        %742 = vmatprep.subr.mxu0 0.0
        %743 = vmatpush1.msra.mxu0 %v620
        %744 = vmatprep.subr.mxu0 0.0
        %745 = vmatpush1.msra.mxu0 %v623
        %746 = vmatprep.subr.mxu0 0.0
        %747 = vmatpush1.msra.mxu0 %v626
        %748 = vmatprep.subr.mxu0 0.0
        %749 = vmatpush1.msra.mxu0 %v629
        %750 = vmatprep.subr.mxu0 0.0
        %751 = vmatpush1.msra.mxu0 %v632
        %752 = vmatprep.subr.mxu0 0.0
        %753 = vmatpush1.msra.mxu0 %v635
        %754 = vmatprep.subr.mxu0 0.0
        %755 = vmatpush1.msra.mxu0 %v638
        %756 = vmatprep.subr.mxu0 0.0
        %757 = vmatpush1.msra.mxu0 %v641
        %758 = vmatprep.subr.mxu0 0.0
        %759 = vmatpush1.msra.mxu0 %v644
        %760 = vmatprep.subr.mxu0 0.0
        %761 = vmatpush1.msra.mxu0 %v647
        %762 = vmatprep.subr.mxu0 0.0
        %763 = vmatpush1.msra.mxu0 %v650
        %764 = vmatprep.subr.mxu0 0.0
        %765 = vmatpush1.msra.mxu0 %v653
        %766 = vmatprep.subr.mxu0 0.0
        %767 = vmatpush1.msra.mxu0 %v656
        %768 = vmatprep.subr.mxu0 0.0
        %769 = vmatpush1.msra.mxu0 %v659
        %770 = vmatprep.subr.mxu0 0.0
        %771 = vmatpush1.msra.mxu0 %v662
        %772 = vmatprep.subr.mxu0 0.0
        %773 = vmatpush1.msra.mxu0 0.0
        %774 = vmatprep.subr.mxu0 0.0
        %775 = vmatpush1.msra.mxu0 0.0
        %776 = vmatprep.subr.mxu0 0.0
        %777 = vmatpush1.msra.mxu0 0.0
        %778 = vmatprep.subr.mxu0 0.0
        %779 = vmatpush1.msra.mxu0 0.0
        %780 = vmatprep.subr.mxu0 0.0
        %781 = vmatpush1.msra.mxu0 0.0
        %782 = vmatprep.subr.mxu0 0.0
        %783 = vmatpush1.msra.mxu0 0.0
        %784 = vmatprep.subr.mxu0 0.0
        %785 = vmatpush1.msra.mxu0 0.0
        %786 = vmatprep.subr.mxu0 0.0
        %787 = vmatpush1.msra.mxu0 0.0
        %788 = vmatprep.subr.mxu0 0.0
        %789 = vmatpush1.msra.mxu0 0.0
        %790 = vmatprep.subr.mxu0 0.0
        %791 = vmatpush1.msra.mxu0 0.0
        %792 = vmatprep.subr.mxu0 0.0
        %793 = vmatpush1.msra.mxu0 0.0
        %794 = vmatprep.subr.mxu0 0.0
        %795 = vmatpush1.msra.mxu0 0.0
        %796 = vmatprep.subr.mxu0 0.0
        %797 = vmatpush1.msra.mxu0 0.0
        %798 = vmatprep.subr.mxu0 0.0
        %799 = vmatpush1.msra.mxu0 0.0
        %800 = vmatprep.subr.mxu0 0.0
        %801 = vmatpush1.msra.mxu0 0.0
        %802 = vmatprep.subr.mxu0 0.0
        %803 = vmatpush1.msra.mxu0 0.0
        %804 = vmatprep.mubr.f32.mxu0 0.0
        %805 = vmatmul.mubr.f32.gmra.mrb[0].mxu0 %v413
        %v806 = vpop.f32.mrb[0].mxu0
        %v807 = vadd.f32 0.0, %v806
        %v808 = vpop.f32.mrb[0].mxu0
        %809 = vmatprep.mubr.f32.mxu0 0.0
        %810 = vmatmul.mubr.f32.gmra.mrb[0].mxu0 %v414
        %v811 = vpop.f32.mrb[0].mxu0
        %v812 = vadd.f32 0.0, %v811
        %v813 = vpop.f32.mrb[0].mxu0
        %814 = vdwg.mxu0
        %v815 = vmul.f32 %v607, 0.5
        %v816 = vmul.f32 %v612, 0.5
        %v817 = vmul.f32 %v607, 0.70710677
        %v818 = vmul.f32 %v612, 0.70710677
        %v819 = vand.u32 2147483647, %v817
        %v820 = vand.u32 2147483647, %v818
        %v821 = vmul.f32 %v819, 0.3275911
        %v822 = vmul.f32 %v820, 0.3275911
        %v823 = vadd.f32 %v821, 1.0
        %v824 = vadd.f32 %v822, 1.0
        %v825 = vrcp.pop %v823
        %v826 = vmul.f32 1.0, %v825
        %v827 = vrcp.pop %v824
        %v828 = vmul.f32 1.0, %v827
        %v829 = vmul.f32 %v826, 1.0614054
        %v830 = vmul.f32 %v828, 1.0614054
        %v831 = vadd.f32 %v829, -1.4531521
        %v832 = vadd.f32 %v830, -1.4531521
        %v833 = vmul.f32 %v831, %v826
        %v834 = vmul.f32 %v832, %v828
        %v835 = vadd.f32 %v833, 1.4214138
        %v836 = vadd.f32 %v834, 1.4214138
        %v837 = vmul.f32 %v835, %v826
        %v838 = vmul.f32 %v836, %v828
        %v839 = vadd.f32 %v837, -0.28449672
        %v840 = vadd.f32 %v838, -0.28449672
        %v841 = vmul.f32 %v839, %v826
        %v842 = vmul.f32 %v840, %v828
        %v843 = vadd.f32 %v841, 0.2548296
        %v844 = vadd.f32 %v842, 0.2548296
        %v845 = vmul.f32 %v843, %v826
        %v846 = vmul.f32 %v844, %v828
        %v847 = vsub.f32 0.0, %v819
        %v848 = vsub.f32 0.0, %v820
        %v849 = vmul.f32 %v847, %v819
        %v850 = vmul.f32 %v848, %v820
        %v851 = vmul.f32 %v849, 1.442695
        %v852 = vpow.pop %v851
        %v853 = vmul.f32 %v850, 1.442695
        %v854 = vpow.pop %v853
        %v855 = vmul.f32 %v845, %v852
        %v856 = vmul.f32 %v846, %v854
        %v857 = vsub.f32 1.0, %v855
        %v858 = vsub.f32 1.0, %v856
        %vm859 = vcmp.ge.f32.partialorder %v817, 0.0
        %vm860 = vcmp.ge.f32.partialorder %v818, 0.0
        %v861 = vsub.f32 0.0, %v857
        %v862 = vsub.f32 0.0, %v858
        %v863 = vsel %vm859, %v857, %v861
        %v864 = vsel %vm860, %v858, %v862
        %v865 = vadd.f32 %v863, 1.0
        %v866 = vadd.f32 %v864, 1.0
        %v867 = vmul.f32 %v815, %v865
        %v868 = vmul.f32 %v816, %v866
        %v869 = vmul.f32 %v532, %v867
        %v870 = vmul.f32 %v538, %v868
        %v871 = vmul.f32 %v807, 0.5
        %v872 = vmul.f32 %v812, 0.5
        %v873 = vmul.f32 %v807, 0.70710677
        %v874 = vmul.f32 %v812, 0.70710677
        %v875 = vand.u32 2147483647, %v873
        %v876 = vand.u32 2147483647, %v874
        %v877 = vmul.f32 %v875, 0.3275911
        %v878 = vmul.f32 %v876, 0.3275911
        %v879 = vadd.f32 %v877, 1.0
        %v880 = vadd.f32 %v878, 1.0
        %v881 = vrcp.pop %v879
        %v882 = vmul.f32 1.0, %v881
        %v883 = vrcp.pop %v880
        %v884 = vmul.f32 1.0, %v883
        %v885 = vmul.f32 %v882, 1.0614054
        %v886 = vmul.f32 %v884, 1.0614054
        %v887 = vadd.f32 %v885, -1.4531521
        %v888 = vadd.f32 %v886, -1.4531521
        %v889 = vmul.f32 %v887, %v882
        %v890 = vmul.f32 %v888, %v884
        %v891 = vadd.f32 %v889, 1.4214138
        %v892 = vadd.f32 %v890, 1.4214138
        %v893 = vmul.f32 %v891, %v882
        %v894 = vmul.f32 %v892, %v884
        %v895 = vadd.f32 %v893, -0.28449672
        %v896 = vadd.f32 %v894, -0.28449672
        %v897 = vmul.f32 %v895, %v882
        %v898 = vmul.f32 %v896, %v884
        %v899 = vadd.f32 %v897, 0.2548296
        %v900 = vadd.f32 %v898, 0.2548296
        %v901 = vmul.f32 %v899, %v882
        %v902 = vmul.f32 %v900, %v884
        %v903 = vsub.f32 0.0, %v875
        %v904 = vsub.f32 0.0, %v876
        %v905 = vmul.f32 %v903, %v875
        %v906 = vmul.f32 %v904, %v876
        %v907 = vmul.f32 %v905, 1.442695
        %v908 = vpow.pop %v907
        %v909 = vmul.f32 %v906, 1.442695
        %v910 = vpow.pop %v909
        %v911 = vmul.f32 %v901, %v908
        %v912 = vmul.f32 %v902, %v910
        %v913 = vsub.f32 1.0, %v911
        %v914 = vsub.f32 1.0, %v912
        %vm915 = vcmp.ge.f32.partialorder %v873, 0.0
        %vm916 = vcmp.ge.f32.partialorder %v874, 0.0
        %v917 = vsub.f32 0.0, %v913
        %v918 = vsub.f32 0.0, %v914
        %v919 = vsel %vm915, %v913, %v917
        %v920 = vsel %vm916, %v914, %v918
        %v921 = vadd.f32 %v919, 1.0
        %v922 = vadd.f32 %v920, 1.0
        %v923 = vmul.f32 %v871, %v921
        %v924 = vmul.f32 %v872, %v922
        %v925 = vmul.f32 %v732, %v923
        %v926 = vmul.f32 %v738, %v924
        %v927 = vld [vmem:[#allocation2] sm:$0xff]
        %v928 = vld [vmem:[#allocation2 + $0x8] sm:$0xff]
        %929 = vmatprep.subr.mxu0 0.0
        %930 = vmatpush1.xpose.msra.mxu0 %v530
        %931 = vmatprep.subr.mxu0 0.0
        %932 = vmatpush1.xpose.msra.mxu0 %v536
        %933 = vmatprep.subr.mxu0 0.0
        %934 = vmatpush1.xpose.msra.mxu0 0.0
        %935 = vmatprep.subr.mxu0 0.0
        %936 = vmatpush1.xpose.msra.mxu0 0.0
        %937 = vmatprep.subr.mxu0 0.0
        %938 = vmatpush1.xpose.msra.mxu0 0.0
        %939 = vmatprep.subr.mxu0 0.0
        %940 = vmatpush1.xpose.msra.mxu0 0.0
        %941 = vmatprep.subr.mxu0 0.0
        %942 = vmatpush1.xpose.msra.mxu0 0.0
        %943 = vmatprep.subr.mxu0 0.0
        %944 = vmatpush1.xpose.msra.mxu0 0.0
        %945 = vmatprep.subr.mxu0 0.0
        %946 = vmatpush1.xpose.msra.mxu0 0.0
        %947 = vmatprep.subr.mxu0 0.0
        %948 = vmatpush1.xpose.msra.mxu0 0.0
        %949 = vmatprep.subr.mxu0 0.0
        %950 = vmatpush1.xpose.msra.mxu0 0.0
        %951 = vmatprep.subr.mxu0 0.0
        %952 = vmatpush1.xpose.msra.mxu0 0.0
        %953 = vmatprep.subr.mxu0 0.0
        %954 = vmatpush1.xpose.msra.mxu0 0.0
        %955 = vmatprep.subr.mxu0 0.0
        %956 = vmatpush1.xpose.msra.mxu0 0.0
        %957 = vmatprep.subr.mxu0 0.0
        %958 = vmatpush1.xpose.msra.mxu0 0.0
        %959 = vmatprep.subr.mxu0 0.0
        %960 = vmatpush1.xpose.msra.mxu0 0.0
        %961 = vmatprep.subr.mxu0 0.0
        %962 = vmatpush1.xpose.msra.mxu0 0.0
        %963 = vmatprep.subr.mxu0 0.0
        %964 = vmatpush1.xpose.msra.mxu0 0.0
        %965 = vmatprep.subr.mxu0 0.0
        %966 = vmatpush1.xpose.msra.mxu0 0.0
        %967 = vmatprep.subr.mxu0 0.0
        %968 = vmatpush1.xpose.msra.mxu0 0.0
        %969 = vmatprep.subr.mxu0 0.0
        %970 = vmatpush1.xpose.msra.mxu0 0.0
        %971 = vmatprep.subr.mxu0 0.0
        %972 = vmatpush1.xpose.msra.mxu0 0.0
        %973 = vmatprep.subr.mxu0 0.0
        %974 = vmatpush1.xpose.msra.mxu0 0.0
        %975 = vmatprep.subr.mxu0 0.0
        %976 = vmatpush1.xpose.msra.mxu0 0.0
        %977 = vmatprep.subr.mxu0 0.0
        %978 = vmatpush1.xpose.msra.mxu0 0.0
        %979 = vmatprep.subr.mxu0 0.0
        %980 = vmatpush1.xpose.msra.mxu0 0.0
        %981 = vmatprep.subr.mxu0 0.0
        %982 = vmatpush1.xpose.msra.mxu0 0.0
        %983 = vmatprep.subr.mxu0 0.0
        %984 = vmatpush1.xpose.msra.mxu0 0.0
        %985 = vmatprep.subr.mxu0 0.0
        %986 = vmatpush1.xpose.msra.mxu0 0.0
        %987 = vmatprep.subr.mxu0 0.0
        %988 = vmatpush1.xpose.msra.mxu0 0.0
        %989 = vmatprep.subr.mxu0 0.0
        %990 = vmatpush1.xpose.msra.mxu0 0.0
        %991 = vmatprep.subr.mxu0 0.0
        %992 = vmatpush1.xpose.msra.mxu0 0.0
        %993 = vmatprep.mubr.f32.mxu0 0.0
        %994 = vmatmul.mubr.f32.gmra.mrb[0].mxu0 %v730
        %v995 = vpop.f32.mrb[0].mxu0
        %v996 = vadd.f32 %v927, %v995
        %v997 = vpop.f32.mrb[0].mxu0
        %998 = vmatprep.mubr.f32.mxu0 0.0
        %999 = vmatmul.mubr.f32.gmra.mrb[0].mxu0 %v736
        %v1000 = vpop.f32.mrb[0].mxu0
        %v1001 = vadd.f32 %v928, %v1000
        %v1002 = vpop.f32.mrb[0].mxu0
        %1003 = vdwg.mxu0
        %vm1004 = vcmask 130048
        %v1005 = vsel %vm1004, %v996, -inf
        %1006 = vmax.xlane.f32.xlu0 %v1005
        %v1007 = vpop.xlane.xlu0 %1006
        %v1008 = vsel %vm1004, %v1001, -inf
        %1009 = vmax.xlane.f32.xlu0 %v1008
        %v1010 = vpop.xlane.xlu0 %1009
        %v1011 = vsub.f32 %v996, %v1007
        %v1012 = vsub.f32 %v1001, %v1010
        %v1013 = vmul.f32 %v1011, 1.442695
        %v1014 = vpow.pop %v1013
        %v1015 = vmul.f32 %v1012, 1.442695
        %v1016 = vpow.pop %v1015
        %v1017 = vsel %vm1004, %v1014, 0.0
        %1018 = vadd.xlane.f32.xlu0 %v1017
        %v1019 = vpop.xlane.xlu0 %1018
        %v1020 = vsel %vm1004, %v1016, 0.0
        %1021 = vadd.xlane.f32.xlu0 %v1020
        %v1022 = vpop.xlane.xlu0 %1021
        %v1024 = vsel %vm1004, %v1014, 0
        %v1027 = vsel %vm1004, %v1016, 0
        %1029 = vmatprep.subr.mxu0 0.0
        %1030 = vmatpush1.msra.mxu0 %v869
        %1031 = vmatprep.subr.mxu0 0.0
        %1032 = vmatpush1.msra.mxu0 %v870
        %1033 = vmatprep.subr.mxu0 0.0
        %1034 = vmatpush1.msra.mxu0 0.0
        %1035 = vmatprep.subr.mxu0 0.0
        %1036 = vmatpush1.msra.mxu0 0.0
        %1037 = vmatprep.subr.mxu0 0.0
        %1038 = vmatpush1.msra.mxu0 0.0
        %1039 = vmatprep.subr.mxu0 0.0
        %1040 = vmatpush1.msra.mxu0 0.0
        %1041 = vmatprep.subr.mxu0 0.0
        %1042 = vmatpush1.msra.mxu0 0.0
        %1043 = vmatprep.subr.mxu0 0.0
        %1044 = vmatpush1.msra.mxu0 0.0
        %1045 = vmatprep.subr.mxu0 0.0
        %1046 = vmatpush1.msra.mxu0 0.0
        %1047 = vmatprep.subr.mxu0 0.0
        %1048 = vmatpush1.msra.mxu0 0.0
        %1049 = vmatprep.subr.mxu0 0.0
        %1050 = vmatpush1.msra.mxu0 0.0
        %1051 = vmatprep.subr.mxu0 0.0
        %1052 = vmatpush1.msra.mxu0 0.0
        %1053 = vmatprep.subr.mxu0 0.0
        %1054 = vmatpush1.msra.mxu0 0.0
        %1055 = vmatprep.subr.mxu0 0.0
        %1056 = vmatpush1.msra.mxu0 0.0
        %1057 = vmatprep.subr.mxu0 0.0
        %1058 = vmatpush1.msra.mxu0 0.0
        %1059 = vmatprep.subr.mxu0 0.0
        %1060 = vmatpush1.msra.mxu0 0.0
        %1061 = vmatprep.subr.mxu0 0.0
        %1062 = vmatpush1.msra.mxu0 0.0
        %1063 = vmatprep.subr.mxu0 0.0
        %1064 = vmatpush1.msra.mxu0 0.0
        %1065 = vmatprep.subr.mxu0 0.0
        %1066 = vmatpush1.msra.mxu0 0.0
        %1067 = vmatprep.subr.mxu0 0.0
        %1068 = vmatpush1.msra.mxu0 0.0
        %1069 = vmatprep.subr.mxu0 0.0
        %1070 = vmatpush1.msra.mxu0 0.0
        %1071 = vmatprep.subr.mxu0 0.0
        %1072 = vmatpush1.msra.mxu0 0.0
        %1073 = vmatprep.subr.mxu0 0.0
        %1074 = vmatpush1.msra.mxu0 0.0
        %1075 = vmatprep.subr.mxu0 0.0
        %1076 = vmatpush1.msra.mxu0 0.0
        %1077 = vmatprep.subr.mxu0 0.0
        %1078 = vmatpush1.msra.mxu0 0.0
        %1079 = vmatprep.subr.mxu0 0.0
        %1080 = vmatpush1.msra.mxu0 0.0
        %1081 = vmatprep.subr.mxu0 0.0
        %1082 = vmatpush1.msra.mxu0 0.0
        %1083 = vmatprep.subr.mxu0 0.0
        %1084 = vmatpush1.msra.mxu0 0.0
        %1085 = vmatprep.subr.mxu0 0.0
        %1086 = vmatpush1.msra.mxu0 0.0
        %1087 = vmatprep.subr.mxu0 0.0
        %1088 = vmatpush1.msra.mxu0 0.0
        %1089 = vmatprep.subr.mxu0 0.0
        %1090 = vmatpush1.msra.mxu0 0.0
        %1091 = vmatprep.subr.mxu0 0.0
        %1092 = vmatpush1.msra.mxu0 0.0
        %1093 = vmatprep.mubr.f32.mxu0 0.0
        %1094 = vmatmul.mubr.f32.gmra.mrb[0].mxu0 %v1024
        %v1095 = vpop.f32.mrb[0].mxu0
        %v1096 = vadd.f32 0.0, %v1095
        %v1097 = vpop.f32.mrb[0].mxu0
        %1098 = vmatprep.mubr.f32.mxu0 0.0
        %1099 = vmatmul.mubr.f32.gmra.mrb[0].mxu0 %v1027
        %v1100 = vpop.f32.mrb[0].mxu0
        %v1101 = vadd.f32 0.0, %v1100
        %v1102 = vpop.f32.mrb[0].mxu0
        %1103 = vdwg.mxu0
        %v1104 = vrcp.pop %v1019
        %v1105 = vrcp.pop %v1022
        %v1106 = vmul.f32 %v1096, %v1104
        %v1107 = vmul.f32 %v1101, %v1105
        %v1108 = vld [vmem:[#allocation11] sm:$0xff]
        %v1109 = vld [vmem:[#allocation11 + $0x8] sm:$0xff]
        %v1110 = vld [vmem:[#allocation11 + $0x10] sm:$0xff]
        %v1111 = vld [vmem:[#allocation11 + $0x18] sm:$0xff]
        %v1112 = vld [vmem:[#allocation11 + $0x20] sm:$0xff]
        %v1113 = vld [vmem:[#allocation11 + $0x28] sm:$0xff]
        %v1114 = vld [vmem:[#allocation11 + $0x30] sm:$0xff]
        %v1115 = vld [vmem:[#allocation11 + $0x38] sm:$0xff]
        %v1116 = vld [vmem:[#allocation11 + $0x40] sm:$0xff]
        %v1117 = vld [vmem:[#allocation11 + $0x48] sm:$0xff]
        %v1118 = vld [vmem:[#allocation11 + $0x50] sm:$0xff]
        %v1119 = vld [vmem:[#allocation11 + $0x58] sm:$0xff]
        %v1120 = vld [vmem:[#allocation11 + $0x60] sm:$0xff]
        %v1121 = vld [vmem:[#allocation11 + $0x68] sm:$0xff]
        %v1122 = vld [vmem:[#allocation11 + $0x70] sm:$0xff]
        %v1123 = vld [vmem:[#allocation11 + $0x78] sm:$0xff]
        %v1124 = vld [vmem:[#allocation11 + $0x80] sm:$0xff]
        %v1125 = vld [vmem:[#allocation11 + $0x88] sm:$0xff]
        %v1126 = vld [vmem:[#allocation11 + $0x90] sm:$0xff]
        %v1127 = vld [vmem:[#allocation11 + $0x98] sm:$0xff]
        %v1128 = vld [vmem:[#allocation11 + $0xa0] sm:$0xff]
        %v1129 = vld [vmem:[#allocation11 + $0xa8] sm:$0xff]
        %v1130 = vld [vmem:[#allocation11 + $0xb0] sm:$0xff]
        %v1131 = vld [vmem:[#allocation11 + $0xb8] sm:$0xff]
        %v1132 = vld [vmem:[#allocation11 + $0xc0] sm:$0xff]
        %v1133 = vld [vmem:[#allocation11 + $0xc8] sm:$0xff]
        %v1134 = vld [vmem:[#allocation11 + $0xd0] sm:$0xff]
        %v1135 = vld [vmem:[#allocation11 + $0xd8] sm:$0xff]
        %v1136 = vld [vmem:[#allocation11 + $0xe0] sm:$0xff]
        %v1137 = vld [vmem:[#allocation11 + $0xe8] sm:$0xff]
        %v1138 = vld [vmem:[#allocation11 + $0xf0] sm:$0xff]
        %v1139 = vld [vmem:[#allocation11 + $0xf8] sm:$0xff]
        %1140 = vmatprep.subr.mxu0 0.0
        %1141 = vmatpush1.msra.mxu0 %v1108
        %1142 = vmatprep.subr.mxu0 0.0
        %1143 = vmatpush1.msra.mxu0 %v1109
        %1144 = vmatprep.subr.mxu0 0.0
        %1145 = vmatpush1.msra.mxu0 %v1110
        %1146 = vmatprep.subr.mxu0 0.0
        %1147 = vmatpush1.msra.mxu0 %v1111
        %1148 = vmatprep.subr.mxu0 0.0
        %1149 = vmatpush1.msra.mxu0 %v1112
        %1150 = vmatprep.subr.mxu0 0.0
        %1151 = vmatpush1.msra.mxu0 %v1113
        %1152 = vmatprep.subr.mxu0 0.0
        %1153 = vmatpush1.msra.mxu0 %v1114
        %1154 = vmatprep.subr.mxu0 0.0
        %1155 = vmatpush1.msra.mxu0 %v1115
        %1156 = vmatprep.subr.mxu0 0.0
        %1157 = vmatpush1.msra.mxu0 %v1116
        %1158 = vmatprep.subr.mxu0 0.0
        %1159 = vmatpush1.msra.mxu0 %v1117
        %1160 = vmatprep.subr.mxu0 0.0
        %1161 = vmatpush1.msra.mxu0 %v1118
        %1162 = vmatprep.subr.mxu0 0.0
        %1163 = vmatpush1.msra.mxu0 %v1119
        %1164 = vmatprep.subr.mxu0 0.0
        %1165 = vmatpush1.msra.mxu0 %v1120
        %1166 = vmatprep.subr.mxu0 0.0
        %1167 = vmatpush1.msra.mxu0 %v1121
        %1168 = vmatprep.subr.mxu0 0.0
        %1169 = vmatpush1.msra.mxu0 %v1122
        %1170 = vmatprep.subr.mxu0 0.0
        %1171 = vmatpush1.msra.mxu0 %v1123
        %1172 = vmatprep.subr.mxu0 0.0
        %1173 = vmatpush1.msra.mxu0 %v1124
        %1174 = vmatprep.subr.mxu0 0.0
        %1175 = vmatpush1.msra.mxu0 %v1125
        %1176 = vmatprep.subr.mxu0 0.0
        %1177 = vmatpush1.msra.mxu0 %v1126
        %1178 = vmatprep.subr.mxu0 0.0
        %1179 = vmatpush1.msra.mxu0 %v1127
        %1180 = vmatprep.subr.mxu0 0.0
        %1181 = vmatpush1.msra.mxu0 %v1128
        %1182 = vmatprep.subr.mxu0 0.0
        %1183 = vmatpush1.msra.mxu0 %v1129
        %1184 = vmatprep.subr.mxu0 0.0
        %1185 = vmatpush1.msra.mxu0 %v1130
        %1186 = vmatprep.subr.mxu0 0.0
        %1187 = vmatpush1.msra.mxu0 %v1131
        %1188 = vmatprep.subr.mxu0 0.0
        %1189 = vmatpush1.msra.mxu0 %v1132
        %1190 = vmatprep.subr.mxu0 0.0
        %1191 = vmatpush1.msra.mxu0 %v1133
        %1192 = vmatprep.subr.mxu0 0.0
        %1193 = vmatpush1.msra.mxu0 %v1134
        %1194 = vmatprep.subr.mxu0 0.0
        %1195 = vmatpush1.msra.mxu0 %v1135
        %1196 = vmatprep.subr.mxu0 0.0
        %1197 = vmatpush1.msra.mxu0 %v1136
        %1198 = vmatprep.subr.mxu0 0.0
        %1199 = vmatpush1.msra.mxu0 %v1137
        %1200 = vmatprep.subr.mxu0 0.0
        %1201 = vmatpush1.msra.mxu0 %v1138
        %1202 = vmatprep.subr.mxu0 0.0
        %1203 = vmatpush1.msra.mxu0 %v1139
        %1204 = vmatprep.mubr.f32.mxu0 %v1106
        %1205 = vmatmul.mubr.f32.gmra.mrb[0].mxu0 %v925
        %v1206 = vpop.f32.mrb[0].mxu0
        %v1207 = vadd.f32 0.0, %v1206
        %v1208 = vpop.f32.mrb[0].mxu0
        %1209 = vmatprep.mubr.f32.mxu0 %v1107
        %1210 = vmatmul.mubr.f32.gmra.mrb[0].mxu0 %v926
        %v1211 = vpop.f32.mrb[0].mxu0
        %v1212 = vadd.f32 0.0, %v1211
        %v1213 = vpop.f32.mrb[0].mxu0
        %1214 = vdwg.mxu0
        %v1215 = vadd.f32 %v368, %v1207
        %v1216 = vadd.f32 %v369, %v1212
        %1217 = vst [vmem:[%s365] sm:$0xff] %v1215
        %1218 = vst [vmem:[%s365 + $0x8] sm:$0xff] %v1216
        %s1219 = sand.u32 %s170, 1
        %s1220 = scalar_lea.sflag [#allocation4], %s1219
        %s1221 = sand.u32 %s170, 1
        %s1222 = smul.addr %s1221, 16
        %s1223 = scalar_lea.vmem [#allocation13], %s1222
        // Predicated region
        $region69: #{tpu_custom_call.1} parent=43 // pred_check
          %p1224 = pneg %p180
        $region70: #{tpu_custom_call.1} parent=43 // pred_check_branch
          %1226 = sbr.rel (%p1224) target = $region72
        $region71: #{tpu_custom_call.1} parent=43 // pred_region
          %s1228 = ssub.s32 256, 256
          %1229 = vsyncadd %s1220, %s1228
          %s1230 = smul.addr %s26, 2
          %s1231 = smul.addr %s1230, 128
          %s1232 = scalar_lea.hbm %s6, %s1231
          %s1233 = sshll.u32 %s1223, 4
          %s1234 = int_to_ptr.vmem [resolvable:$true] %s1233
          %1239 = dma.vmem_to_hbm [thread:$0]  %s1234, 256, %s1232, %s1220, 128, 128, 8
        $region72: #{tpu_custom_call.1} parent=43 // pred_fallthru
          _
      $region44: #{tpu_custom_call.1} parent=5 // pred_fallthru
        _
      %p1240 = scmp.le.s32.totalorder 2, %s21
      // Predicated region
      $region73: #{tpu_custom_call.1} parent=5 // pred_check
        %p1241 = pneg %p1240
      $region74: #{tpu_custom_call.1} parent=5 // pred_check_branch
        %1243 = sbr.rel (%p1241) target = $region76
      $region75: #{tpu_custom_call.1} parent=5 // pred_region
        %s1244 = ssub.s32 %s21, 2
        // Predicated region
        $region77: #{tpu_custom_call.1} parent=75 // pred_check
          %p1245 = pneg %p186
        $region78: #{tpu_custom_call.1} parent=75 // pred_check_branch
          %1247 = sbr.rel (%p1245) target = $region80
        $region79: #{tpu_custom_call.1} parent=75 // pred_region
          %s1248 = sand.u32 %s171, 1
          %s1249 = scalar_lea.sflag [#allocation4], %s1248
          %s1250 = sand.u32 %s171, 1
          %s1251 = smul.addr %s1250, 16
          %s1252 = scalar_lea.vmem [#allocation13], %s1251
          %1253 = dma.done %s1249, 256
        $region80: #{tpu_custom_call.1} parent=75 // pred_fallthru
          _
      $region76: #{tpu_custom_call.1} parent=5 // pred_fallthru
        _
    $region6: #{tpu_custom_call.1} parent=1 // loop_footer
      %s25 = sadd.s32 1, %s21
    $region7: #{tpu_custom_call.1} parent=1 // loop_footer_branch
      %20 = sbr.rel target = $region3
    $region8: #{tpu_custom_call.1} parent=1 // loop_exit
      _
    %1254 = vsyncpa [#allocation3], 1
    %s1255 = scalar_lea.sflag [#allocation3], 1
    %1256 = vsyncpa %s1255, 1
    %1257 = vsyncpa [#allocation6], 1
    %s1258 = scalar_lea.sflag [#allocation6], 1
    %1259 = vsyncpa %s1258, 1
    %1260 = vsyncpa [#allocation9], 1
    %1261 = vsyncpa [#allocation12], 1
    %1262 = vsyncpa [#allocation4], 1
    %s1263 = scalar_lea.sflag [#allocation4], 1
    %1264 = vsyncpa %s1263, 1

</llo_original>
